<compile_context>
chip_gen: v7x
topology: tpu7x:2x2x1
jax: 0.10.0
libtpu: 0.0.40
codegen_flags: <defaults>
</compile_context>

<pallas_src>
import functools

import jax
import jax.numpy as jnp
from jax.experimental import pallas as pl
from jax.experimental.pallas import tpu as pltpu


BBOX_XFORM_CLIP = 4.135166556742356   # log(1000. / 16.)
HALO = 3                              # 1 recomputed halo row per stacked 3x3 conv
NEG_INF = -1e30


def _round_up(x, m):
    return ((x + m - 1) // m) * m


# ----------------------------------------------------------------------------
# Fused backbone + RPN head + box-decode kernel: one (image, H-strip) per step
# ----------------------------------------------------------------------------
def _fused_rcnn_kernel(x_ref, aux_ref, w1_ref, b1_ref, w2_ref, b2_ref,
                       wr_ref, br_ref, wh_ref, bh_ref, sz_ref,
                       out_ref, stage_ref, frame_ref, *,
                       H, W, R, A, C, CIN_P, HALVES, OUT_ROWS, L_PAD):
    """Channels on sublanes, flattened padded spatial on lanes ("wide" layout:
    column p = h*(W+2) + w holds pixel (h, w) for w < W).  Everything after
    the input DMA stays in VMEM."""
    Wp = W + 2
    Rin = R + 2 * HALO              # input rows per strip (recomputed halo)
    R1, R2 = Rin - 2, Rin - 4       # valid rows after conv1 / conv2
    L1 = (R1 - 1) * Wp + W          # wide-layout lengths per layer
    L2 = (R2 - 1) * Wp + W
    L3 = (R - 1) * Wp + W

    b = pl.program_id(0)
    s = pl.program_id(1)
    row0 = (s * R).astype(jnp.float32)      # global image row of output row 0
    im_h = sz_ref[b, 0]
    im_w = sz_ref[b, 1]

    aux = aux_ref[...]                      # (3, L1) f32 per-column basis
    col_ok = aux[0:1]                       # 1.0 where (p % Wp) < W
    h_loc = aux[1:2]                        # float(p // Wp)
    w_loc = aux[2:3]                        # float(p %  Wp)

    def conv3x3(x_pad, cin, l_out, w_ref, b_ref):
        # K-stacked conv: stage the 9 tap-shifted windows into VMEM scratch and
        # contract in ONE MXU dot of depth 9*cin (instead of nine K=cin dots).
        for j in range(9):
            sh = (j // 3) * Wp + (j % 3)
            stage_ref[j * cin:(j + 1) * cin, 0:l_out] = x_pad[:, sh:sh + l_out]
        acc = jnp.dot(w_ref[...], stage_ref[0:9 * cin, 0:l_out],
                      preferred_element_type=jnp.float32)
        return jnp.maximum(acc + b_ref[...], 0.0)      # bias + ReLU, (C, l_out) f32

    def store_frame(y, ok, l_out, rows):
        # Embed the masked wide conv output as the next conv's 1-column
        # zero-padded input frame: write only the live region + 2 halo columns
        # (bf16 intermediate in persistent scratch, no concatenate rebuild).
        frame_ref[:, 0:1] = jnp.zeros((C, 1), jnp.bfloat16)
        frame_ref[:, 1:1 + l_out] = (y * ok).astype(jnp.bfloat16)
        frame_ref[:, 1 + l_out:rows * Wp] = jnp.zeros(
            (C, rows * Wp - 1 - l_out), jnp.bfloat16)

    # ---- backbone conv1 ------------------------------------------------------
    f1 = conv3x3(x_ref[...], CIN_P, L1, w1_ref, b1_ref)             # (C, L1)
    g1 = row0 - 2.0 + h_loc                                         # global rows
    ok1 = col_ok * jnp.where((g1 >= 0.0) & (g1 <= H - 1.0), 1.0, 0.0)
    store_frame(f1, ok1, L1, R1)

    # ---- backbone conv2 ------------------------------------------------------
    f2 = conv3x3(frame_ref[:, 0:R1 * Wp], C, L2, w2_ref, b2_ref)    # (C, L2)
    g2 = row0 - 1.0 + h_loc[:, :L2]
    ok2 = col_ok[:, :L2] * jnp.where((g2 >= 0.0) & (g2 <= H - 1.0), 1.0, 0.0)
    store_frame(f2, ok2, L2, R2)

    # ---- RPN 3x3 conv + fused cls/box 1x1 head -------------------------------
    t = conv3x3(frame_ref[:, 0:R2 * Wp], C, L3, wr_ref, br_ref)     # (C, L3)
    head = jnp.dot(wh_ref[...], t.astype(jnp.bfloat16),
                   preferred_element_type=jnp.float32) + bh_ref[...]  # (NH_P, L3)

    # ---- fused RPN box decode + sigmoid (anchors generated in-kernel) --------
    logits = head[0:A]                       # (A, L3)
    dx = head[A:2 * A]
    dy = head[2 * A:3 * A]
    dw = jnp.minimum(head[3 * A:4 * A], BBOX_XFORM_CLIP)
    dh = jnp.minimum(head[4 * A:5 * A], BBOX_XFORM_CLIP)

    xg = w_loc[:, :L3]                       # anchor grid centers (stride 1.0)
    yg = row0 + h_loc[:, :L3]
    half = jnp.concatenate(
        [jnp.full((1, 1), hv, jnp.float32) for hv in HALVES], axis=0)   # (A, 1)
    ax1, ay1 = xg - half, yg - half          # (A, L3) anchors, xyxy
    ax2, ay2 = xg + half, yg + half
    widths = ax2 - ax1 + 1.0
    heights = ay2 - ay1 + 1.0
    ctr_x = ax1 + 0.5 * widths
    ctr_y = ay1 + 0.5 * heights

    pred_ctr_x = dx * widths + ctr_x
    pred_ctr_y = dy * heights + ctr_y
    pred_w = jnp.exp(dw) * widths
    pred_h = jnp.exp(dh) * heights

    # clip to image (TO_REMOVE = 1 convention, matches BoxList.clip_to_image)
    x1 = jnp.clip(pred_ctr_x - 0.5 * pred_w, 0.0, im_w - 1.0)
    y1 = jnp.clip(pred_ctr_y - 0.5 * pred_h, 0.0, im_h - 1.0)
    x2 = jnp.clip(pred_ctr_x + 0.5 * pred_w - 1.0, 0.0, im_w - 1.0)
    y2 = jnp.clip(pred_ctr_y + 0.5 * pred_h - 1.0, 0.0, im_h - 1.0)

    # wide-garbage columns / out-of-image rows -> -inf scores so the wrapper's
    # top_k can consume the wide layout directly (no pad/reshape/slice in HBM).
    valid = (col_ok[:, :L3] > 0.0) & (yg <= H - 1.0)
    score = jnp.where(valid, jax.nn.sigmoid(logits), NEG_INF)

    pieces = [score, x1, y1, x2, y2]
    if OUT_ROWS > 5 * A:
        pieces.append(jnp.zeros((OUT_ROWS - 5 * A, L3), jnp.float32))
    packed = jnp.concatenate(pieces, axis=0)                 # (OUT_ROWS, L3)
    if L_PAD > L3:
        packed = jnp.concatenate(
            [packed, jnp.full((OUT_ROWS, L_PAD - L3), NEG_INF, jnp.float32)],
            axis=1)
    out_ref[...] = packed


# ----------------------------------------------------------------------------
# ImageList / to_image_list (JAX version)
# ----------------------------------------------------------------------------
class ImageList:
    def __init__(self, tensors, image_sizes):
        self.tensors = tensors
        self.image_sizes = image_sizes


def to_image_list(tensors):
    if isinstance(tensors, ImageList):
        return tensors
    t = jnp.asarray(tensors)
    if t.ndim == 3:
        t = t[None]
    assert t.ndim == 4
    image_sizes = [tuple(int(s) for s in t.shape[-2:])] * t.shape[0]
    return ImageList(t, image_sizes)


def _prep_conv_weight_kstacked(w_hwio, cin_pad=None):
    """(kh, kw, Cin, Cout) HWIO -> (Cout, kh*kw*Cin_pad) bf16, columns ordered
    tap-major (col = tap*Cin_pad + cin), matching the in-kernel staging layout."""
    kh, kw, cin, cout = w_hwio.shape
    w = jnp.transpose(w_hwio, (0, 1, 3, 2)).reshape(kh * kw, cout, cin)
    if cin_pad is not None and cin_pad > cin:
        w = jnp.pad(w, ((0, 0), (0, 0), (0, cin_pad - cin)))
    w = jnp.transpose(w, (1, 0, 2)).reshape(cout, -1)
    return w.astype(jnp.bfloat16)


# ----------------------------------------------------------------------------
# GeneralizedRCNN (JAX / Pallas version, eval mode, empty roi_heads)
# ----------------------------------------------------------------------------
class GeneralizedRCNNPallas:
    """backbone -> rpn -> (roi_heads empty => result = proposals)."""

    def __init__(self, key, in_channels=3, out_channels=32, num_anchors=3,
                 anchor_sizes=(4.0, 8.0, 16.0), post_topk=100, strip_rows=8):
        assert len(anchor_sizes) == num_anchors
        ks = jax.random.split(key, 5)
        s = 0.05
        C, A = out_channels, num_anchors
        self.out_channels = C
        self.num_anchors = A
        self.post_topk = post_topk
        self.strip_rows = strip_rows
        self.halves = tuple((float(sz) - 1.0) / 2.0 for sz in anchor_sizes)
        self.cin_p = _round_up(in_channels, 16)    # bf16 packs 16 sublanes/vreg

        # ---- raw parameters (same shapes / init as the reference model) ----
        bb_w1 = s * jax.random.normal(ks[0], (3, 3, in_channels, C), jnp.float32)
        bb_b1 = jnp.zeros((C,), jnp.float32)
        bb_w2 = s * jax.random.normal(ks[1], (3, 3, C, C), jnp.float32)
        bb_b2 = jnp.zeros((C,), jnp.float32)
        rpn_w = s * jax.random.normal(ks[2], (3, 3, C, C), jnp.float32)
        rpn_b = jnp.zeros((C,), jnp.float32)
        cls_w = s * jax.random.normal(ks[3], (1, 1, C, A), jnp.float32)
        cls_b = jnp.zeros((A,), jnp.float32)
        box_w = s * jax.random.normal(ks[4], (1, 1, C, 4 * A), jnp.float32)
        box_b = jnp.zeros((4 * A,), jnp.float32)

        # ---- kernel-layout parameters (taps stacked along the MXU K dim) ----
        self.w1s = _prep_conv_weight_kstacked(bb_w1, cin_pad=self.cin_p)
        self.b1 = bb_b1.reshape(C, 1)
        self.w2s = _prep_conv_weight_kstacked(bb_w2)
        self.b2 = bb_b2.reshape(C, 1)
        self.wrs = _prep_conv_weight_kstacked(rpn_w)
        self.br = rpn_b.reshape(C, 1)

        # fused cls + box 1x1 heads:
        #   row a           -> objectness logit for anchor a
        #   row A + c*A + a -> box delta coordinate c for anchor a
        # (assumes maskrcnn-benchmark anchor-major bbox_pred channel order a*4+c)
        wh_cls = cls_w[0, 0].T                                     # (A, C)
        wh_box = box_w[0, 0].reshape(C, A, 4).transpose(2, 1, 0).reshape(4 * A, C)
        bh_box = box_b.reshape(A, 4).T.reshape(4 * A)
        wh = jnp.concatenate([wh_cls, wh_box], axis=0)             # (5A, C)
        bh = jnp.concatenate([cls_b, bh_box], axis=0)              # (5A,)
        self.nh_p = _round_up(5 * A, 8)
        self.wh = jnp.pad(wh, ((0, self.nh_p - 5 * A), (0, 0))).astype(jnp.bfloat16)
        self.bh = jnp.pad(bh, (0, self.nh_p - 5 * A)).reshape(self.nh_p, 1)

        self.force_boxes = False
        self.roi_heads = None               # empty roi_heads config

    # -- backbone + RPN head + decode: ONE fused pallas_call ------------------
    def _fused_forward(self, x_nchw, image_sizes):
        B, Cin, H, W = x_nchw.shape
        C, A = self.out_channels, self.num_anchors
        R = min(self.strip_rows, H)
        num_strips = -(-H // R)
        Hpad = num_strips * R
        Wp = W + 2
        Rin = R + 2 * HALO
        R1 = Rin - 2
        L1 = (R1 - 1) * Wp + W
        L3 = (R - 1) * Wp + W
        Lp3 = _round_up(L3, 128)
        out_rows = self.nh_p

        # channels-first, 1-col + HALO-row zero padding, bf16 for the MXU
        xp = jnp.pad(x_nchw, ((0, 0), (0, self.cin_p - Cin),
                              (HALO, Hpad - H + HALO), (1, 1))).astype(jnp.bfloat16)
        # overlapping H-strips (recomputed 3-row halo on each side)
        strips = jnp.stack([xp[:, :, st * R:st * R + Rin, :]
                            for st in range(num_strips)], axis=1)
        strips = strips.reshape(B, num_strips, self.cin_p, Rin * Wp)

        # per-column (validity, row, col) basis for masks + in-kernel anchors;
        # replaces the old (1, L) mask input and the (4, A*H*W) anchors DMA.
        p = jnp.arange(L1, dtype=jnp.int32)
        aux = jnp.stack([(p % Wp < W).astype(jnp.float32),
                         (p // Wp).astype(jnp.float32),
                         (p % Wp).astype(jnp.float32)], axis=0)     # (3, L1)

        imsizes = jnp.array([[float(h), float(w)] for (h, w) in image_sizes],
                            jnp.float32)

        kernel = functools.partial(
            _fused_rcnn_kernel, H=H, W=W, R=R, A=A, C=C, CIN_P=self.cin_p,
            HALVES=self.halves, OUT_ROWS=out_rows, L_PAD=Lp3)

        out = pl.pallas_call(
            kernel,
            out_shape=jax.ShapeDtypeStruct((B, num_strips, out_rows, Lp3),
                                           jnp.float32),
            grid=(B, num_strips),
            in_specs=[
                pl.BlockSpec((None, None, self.cin_p, Rin * Wp),
                             lambda b, st: (b, st, 0, 0)),
                pl.BlockSpec((3, L1), lambda b, st: (0, 0)),
                pl.BlockSpec((C, 9 * self.cin_p), lambda b, st: (0, 0)),
                pl.BlockSpec((C, 1), lambda b, st: (0, 0)),
                pl.BlockSpec((C, 9 * C), lambda b, st: (0, 0)),
                pl.BlockSpec((C, 1), lambda b, st: (0, 0)),
                pl.BlockSpec((C, 9 * C), lambda b, st: (0, 0)),
                pl.BlockSpec((C, 1), lambda b, st: (0, 0)),
                pl.BlockSpec((self.nh_p, C), lambda b, st: (0, 0)),
                pl.BlockSpec((self.nh_p, 1), lambda b, st: (0, 0)),
                pl.BlockSpec(memory_space=pltpu.MemorySpace.SMEM),
            ],
            out_specs=pl.BlockSpec((None, None, out_rows, Lp3),
                                   lambda b, st: (b, st, 0, 0)),
            scratch_shapes=[
                pltpu.VMEM((9 * C, _round_up(L1, 128)), jnp.bfloat16),   # im2col stage
                pltpu.VMEM((C, _round_up(R1 * Wp, 128)), jnp.bfloat16),  # bf16 frame
            ],
            compiler_params=pltpu.CompilerParams(
                dimension_semantics=("parallel", "parallel"),
                vmem_limit_bytes=48 * 1024 * 1024),
        )(strips, aux, self.w1s, self.b1, self.w2s, self.b2,
          self.wrs, self.br, self.wh, self.bh, imsizes)
        return out, (num_strips, A, Lp3)

    # -- proposals: top-k over objectness (XLA epilogue) ----------------------
    def _select_proposals(self, out, dims, image_sizes):
        num_strips, A, Lp3 = dims
        B = out.shape[0]
        M = num_strips * A * Lp3
        scores_all = out[:, :, 0:A, :].reshape(B, M)
        boxes_all = out[:, :, A:5 * A, :].reshape(B, num_strips, 4, A, Lp3)
        boxes_all = jnp.transpose(boxes_all, (0, 1, 3, 4, 2)).reshape(B, M, 4)

        k = min(self.post_topk, M)
        top_scores, idx = jax.lax.top_k(scores_all, k)
        top_boxes = jnp.take_along_axis(boxes_all, idx[..., None], axis=1)

        proposals = []
        for b in range(B):
            im_h, im_w = image_sizes[b]
            # mimics a BoxList(bbox=(k,4)) with an "objectness" score field
            proposals.append({"bbox": top_boxes[b],
                              "scores": top_scores[b],
                              "size": (im_w, im_h),
                              "mode": "xyxy"})
        return proposals

    def __call__(self, images, targets=None):
        images = to_image_list(images)
        out, dims = self._fused_forward(images.tensors, images.image_sizes)
        proposals = self._select_proposals(out, dims, images.image_sizes)
        if self.roi_heads:
            raise NotImplementedError  # TODO(synk): ROI heads disabled by config
        result = proposals             # eval mode with empty roi_heads
        return result


# ----------------------------------------------------------------------------
if __name__ == "__main__":
    key = jax.random.PRNGKey(0)
    k_img, k_model = jax.random.split(key)

    B, C, H, W = 2, 3, 16, 16                 # NCHW input (PyTorch convention)
    images = jax.random.normal(k_img, (B, C, H, W), jnp.float32)

    model = GeneralizedRCNNPallas(k_model)
    result = model(images)

    for r in result:
        jax.block_until_ready(r["bbox"])
        jax.block_until_ready(r["scores"])
        assert r["bbox"].shape == (model.post_topk, 4)
        assert r["scores"].shape == (model.post_topk,)
        assert bool(jnp.all(jnp.isfinite(r["bbox"])))
        assert bool(jnp.all(jnp.isfinite(r["scores"])))

    print("KERNEL_OK")
</pallas_src>

<mosaic_0001>
module attributes {stable_mosaic.version = 11 : i64} {
  func.func @_fused_rcnn_kernel(%arg0: i32, %arg1: i32, %arg2: memref<1x1x16x252xbf16, #tpu.memory_space<vmem>>, %arg3: memref<3x214xf32, #tpu.memory_space<vmem>>, %arg4: memref<32x144xbf16, #tpu.memory_space<vmem>>, %arg5: memref<32x1xf32, #tpu.memory_space<vmem>>, %arg6: memref<32x288xbf16, #tpu.memory_space<vmem>>, %arg7: memref<32x1xf32, #tpu.memory_space<vmem>>, %arg8: memref<32x288xbf16, #tpu.memory_space<vmem>>, %arg9: memref<32x1xf32, #tpu.memory_space<vmem>>, %arg10: memref<16x32xbf16, #tpu.memory_space<vmem>>, %arg11: memref<16x1xf32, #tpu.memory_space<vmem>>, %arg12: memref<2x2xf32, #tpu.memory_space<smem>>, %arg13: memref<1x1x16x256xf32, #tpu.memory_space<vmem>>, %arg14: memref<288x256xbf16, #tpu.memory_space<vmem>>, %arg15: memref<32x256xbf16, #tpu.memory_space<vmem>>) attributes {dimension_semantics = [#tpu.dimension_semantics<parallel>, #tpu.dimension_semantics<parallel>], iteration_bounds = array<i64: 2, 2>, scalar_prefetch = 0 : i64, scratch_operands = 2 : i64, tpu.core_type = #tpu.core_type<tc>, window_params = [{transform_indices = @transform_0, window_bounds = array<i64: 1, 1, 16, 252>}, {pipeline_mode = #tpu.pipeline_mode<synchronous>, transform_indices = @transform_1, window_bounds = array<i64: 3, 214>}, {pipeline_mode = #tpu.pipeline_mode<synchronous>, transform_indices = @transform_2, window_bounds = array<i64: 32, 144>}, {pipeline_mode = #tpu.pipeline_mode<synchronous>, transform_indices = @transform_3, window_bounds = array<i64: 32, 1>}, {pipeline_mode = #tpu.pipeline_mode<synchronous>, transform_indices = @transform_4, window_bounds = array<i64: 32, 288>}, {pipeline_mode = #tpu.pipeline_mode<synchronous>, transform_indices = @transform_5, window_bounds = array<i64: 32, 1>}, {pipeline_mode = #tpu.pipeline_mode<synchronous>, transform_indices = @transform_6, window_bounds = array<i64: 32, 288>}, {pipeline_mode = #tpu.pipeline_mode<synchronous>, transform_indices = @transform_7, window_bounds = array<i64: 32, 1>}, {pipeline_mode = #tpu.pipeline_mode<synchronous>, transform_indices = @transform_8, window_bounds = array<i64: 16, 32>}, {pipeline_mode = #tpu.pipeline_mode<synchronous>, transform_indices = @transform_9, window_bounds = array<i64: 16, 1>}, {transform_indices = @transform_10, window_bounds = array<i64: 2, 2>}, {transform_indices = @transform_11, window_bounds = array<i64: 1, 1, 16, 256>}]} {
    %c8_i32 = arith.constant 8 : i32
    %0 = arith.muli %arg1, %c8_i32 : i32
    %1 = arith.sitofp %0 : i32 to f32
    %2 = arith.index_cast %arg0 : i32 to index
    %c0 = arith.constant 0 : index
    %3 = memref.load %arg12[%2, %c0] : memref<2x2xf32, #tpu.memory_space<smem>>
    %4 = arith.index_cast %arg0 : i32 to index
    %c1 = arith.constant 1 : index
    %5 = memref.load %arg12[%4, %c1] : memref<2x2xf32, #tpu.memory_space<smem>>
    %c0_0 = arith.constant 0 : index
    %c0_1 = arith.constant 0 : index
    %6 = vector.load %arg3[%c0_0, %c0_1] : memref<3x214xf32, #tpu.memory_space<vmem>>, vector<3x214xf32>
    %7 = vector.extract_strided_slice %6 {offsets = [0, 0], sizes = [1, 214], strides = [1, 1]} : vector<3x214xf32> to vector<1x214xf32>
    %8 = vector.extract_strided_slice %6 {offsets = [1, 0], sizes = [1, 214], strides = [1, 1]} : vector<3x214xf32> to vector<1x214xf32>
    %9 = vector.extract_strided_slice %6 {offsets = [2, 0], sizes = [1, 214], strides = [1, 1]} : vector<3x214xf32> to vector<1x214xf32>
    %c0_2 = arith.constant 0 : index
    %c0_3 = arith.constant 0 : index
    %c0_4 = arith.constant 0 : index
    %c0_5 = arith.constant 0 : index
    %10 = vector.load %arg2[%c0_2, %c0_3, %c0_4, %c0_5] : memref<1x1x16x252xbf16, #tpu.memory_space<vmem>>, vector<1x1x16x252xbf16>
    %11 = vector.shape_cast %10 : vector<1x1x16x252xbf16> to vector<16x252xbf16>
    %12 = vector.extract_strided_slice %11 {offsets = [0, 0], sizes = [16, 214], strides = [1, 1]} : vector<16x252xbf16> to vector<16x214xbf16>
    %c0_6 = arith.constant 0 : index
    %c0_7 = arith.constant 0 : index
    %13 = vector.load %arg14[%c0_6, %c0_7] : memref<288x256xbf16, #tpu.memory_space<vmem>>, vector<16x214xbf16>
    tpu.vector_store %arg14[%c0_6, %c0_7], %12 {strides = array<i32>} : memref<288x256xbf16, #tpu.memory_space<vmem>>, vector<16x214xbf16>,
    %14 = vector.extract_strided_slice %11 {offsets = [0, 1], sizes = [16, 214], strides = [1, 1]} : vector<16x252xbf16> to vector<16x214xbf16>
    %c16 = arith.constant 16 : index
    %c0_8 = arith.constant 0 : index
    %15 = vector.load %arg14[%c16, %c0_8] : memref<288x256xbf16, #tpu.memory_space<vmem>>, vector<16x214xbf16>
    tpu.vector_store %arg14[%c16, %c0_8], %14 {strides = array<i32>} : memref<288x256xbf16, #tpu.memory_space<vmem>>, vector<16x214xbf16>,
    %16 = vector.extract_strided_slice %11 {offsets = [0, 2], sizes = [16, 214], strides = [1, 1]} : vector<16x252xbf16> to vector<16x214xbf16>
    %c32 = arith.constant 32 : index
    %c0_9 = arith.constant 0 : index
    %17 = vector.load %arg14[%c32, %c0_9] : memref<288x256xbf16, #tpu.memory_space<vmem>>, vector<16x214xbf16>
    tpu.vector_store %arg14[%c32, %c0_9], %16 {strides = array<i32>} : memref<288x256xbf16, #tpu.memory_space<vmem>>, vector<16x214xbf16>,
    %18 = vector.extract_strided_slice %11 {offsets = [0, 18], sizes = [16, 214], strides = [1, 1]} : vector<16x252xbf16> to vector<16x214xbf16>
    %c48 = arith.constant 48 : index
    %c0_10 = arith.constant 0 : index
    %19 = vector.load %arg14[%c48, %c0_10] : memref<288x256xbf16, #tpu.memory_space<vmem>>, vector<16x214xbf16>
    tpu.vector_store %arg14[%c48, %c0_10], %18 {strides = array<i32>} : memref<288x256xbf16, #tpu.memory_space<vmem>>, vector<16x214xbf16>,
    %20 = vector.extract_strided_slice %11 {offsets = [0, 19], sizes = [16, 214], strides = [1, 1]} : vector<16x252xbf16> to vector<16x214xbf16>
    %c64 = arith.constant 64 : index
    %c0_11 = arith.constant 0 : index
    %21 = vector.load %arg14[%c64, %c0_11] : memref<288x256xbf16, #tpu.memory_space<vmem>>, vector<16x214xbf16>
    tpu.vector_store %arg14[%c64, %c0_11], %20 {strides = array<i32>} : memref<288x256xbf16, #tpu.memory_space<vmem>>, vector<16x214xbf16>,
    %22 = vector.extract_strided_slice %11 {offsets = [0, 20], sizes = [16, 214], strides = [1, 1]} : vector<16x252xbf16> to vector<16x214xbf16>
    %c80 = arith.constant 80 : index
    %c0_12 = arith.constant 0 : index
    %23 = vector.load %arg14[%c80, %c0_12] : memref<288x256xbf16, #tpu.memory_space<vmem>>, vector<16x214xbf16>
    tpu.vector_store %arg14[%c80, %c0_12], %22 {strides = array<i32>} : memref<288x256xbf16, #tpu.memory_space<vmem>>, vector<16x214xbf16>,
    %24 = vector.extract_strided_slice %11 {offsets = [0, 36], sizes = [16, 214], strides = [1, 1]} : vector<16x252xbf16> to vector<16x214xbf16>
    %c96 = arith.constant 96 : index
    %c0_13 = arith.constant 0 : index
    %25 = vector.load %arg14[%c96, %c0_13] : memref<288x256xbf16, #tpu.memory_space<vmem>>, vector<16x214xbf16>
    tpu.vector_store %arg14[%c96, %c0_13], %24 {strides = array<i32>} : memref<288x256xbf16, #tpu.memory_space<vmem>>, vector<16x214xbf16>,
    %26 = vector.extract_strided_slice %11 {offsets = [0, 37], sizes = [16, 214], strides = [1, 1]} : vector<16x252xbf16> to vector<16x214xbf16>
    %c112 = arith.constant 112 : index
    %c0_14 = arith.constant 0 : index
    %27 = vector.load %arg14[%c112, %c0_14] : memref<288x256xbf16, #tpu.memory_space<vmem>>, vector<16x214xbf16>
    tpu.vector_store %arg14[%c112, %c0_14], %26 {strides = array<i32>} : memref<288x256xbf16, #tpu.memory_space<vmem>>, vector<16x214xbf16>,
    %28 = vector.extract_strided_slice %11 {offsets = [0, 38], sizes = [16, 214], strides = [1, 1]} : vector<16x252xbf16> to vector<16x214xbf16>
    %c128 = arith.constant 128 : index
    %c0_15 = arith.constant 0 : index
    %29 = vector.load %arg14[%c128, %c0_15] : memref<288x256xbf16, #tpu.memory_space<vmem>>, vector<16x214xbf16>
    tpu.vector_store %arg14[%c128, %c0_15], %28 {strides = array<i32>} : memref<288x256xbf16, #tpu.memory_space<vmem>>, vector<16x214xbf16>,
    %c0_16 = arith.constant 0 : index
    %c0_17 = arith.constant 0 : index
    %30 = vector.load %arg4[%c0_16, %c0_17] : memref<32x144xbf16, #tpu.memory_space<vmem>>, vector<32x144xbf16>
    %c0_18 = arith.constant 0 : index
    %c0_19 = arith.constant 0 : index
    %31 = vector.load %arg14[%c0_18, %c0_19] : memref<288x256xbf16, #tpu.memory_space<vmem>>, vector<144x214xbf16>
    %cst = arith.constant dense<0.000000e+00> : vector<32x214xf32>
    %32 = tpu.matmul %30, %31, %cst {dimension_numbers = #tpu.dot_dimension_numbers<[1], [0], [0], [1], [0, 0, 1, 1], [], []>} : vector<32x144xbf16>, vector<144x214xbf16>, vector<32x214xf32> -> vector<32x214xf32>
    %c0_20 = arith.constant 0 : index
    %c0_21 = arith.constant 0 : index
    %33 = vector.load %arg5[%c0_20, %c0_21] : memref<32x1xf32, #tpu.memory_space<vmem>>, vector<32x1xf32>
    %34 = vector.broadcast %33 : vector<32x1xf32> to vector<32x214xf32>
    %35 = arith.addf %32, %34 : vector<32x214xf32>
    %cst_22 = arith.constant 0.000000e+00 : f32
    %36 = vector.broadcast %cst_22 : f32 to vector<32x214xf32>
    %37 = arith.maximumf %35, %36 : vector<32x214xf32>
    %cst_23 = arith.constant 2.000000e+00 : f32
    %38 = arith.subf %1, %cst_23 : f32
    %39 = vector.broadcast %38 : f32 to vector<1x214xf32>
    %40 = arith.addf %39, %8 : vector<1x214xf32>
    %cst_24 = arith.constant 0.000000e+00 : f32
    %41 = vector.broadcast %cst_24 : f32 to vector<1x214xf32>
    %42 = arith.cmpf oge, %40, %41 : vector<1x214xf32>
    %cst_25 = arith.constant 1.500000e+01 : f32
    %43 = vector.broadcast %cst_25 : f32 to vector<1x214xf32>
    %44 = arith.cmpf ole, %40, %43 : vector<1x214xf32>
    %45 = arith.andi %42, %44 : vector<1x214xi1>
    %cst_26 = arith.constant 1.000000e+00 : f32
    %cst_27 = arith.constant 0.000000e+00 : f32
    %46 = vector.broadcast %cst_26 : f32 to vector<1x214xf32>
    %47 = vector.broadcast %cst_27 : f32 to vector<1x214xf32>
    %48 = arith.select %45, %46, %47 : vector<1x214xi1>, vector<1x214xf32>
    %49 = arith.mulf %7, %48 : vector<1x214xf32>
    %cst_28 = arith.constant 0.000000e+00 : bf16
    %50 = vector.broadcast %cst_28 : bf16 to vector<32x1xbf16>
    %c0_29 = arith.constant 0 : index
    %c0_30 = arith.constant 0 : index
    %51 = vector.load %arg15[%c0_29, %c0_30] : memref<32x256xbf16, #tpu.memory_space<vmem>>, vector<32x1xbf16>
    tpu.vector_store %arg15[%c0_29, %c0_30], %50 {strides = array<i32>} : memref<32x256xbf16, #tpu.memory_space<vmem>>, vector<32x1xbf16>,
    %52 = vector.broadcast %49 : vector<1x214xf32> to vector<32x214xf32>
    %53 = arith.mulf %37, %52 : vector<32x214xf32>
    %54 = arith.truncf %53 : vector<32x214xf32> to vector<32x214xbf16>
    %c0_31 = arith.constant 0 : index
    %c1_32 = arith.constant 1 : index
    %55 = vector.load %arg15[%c0_31, %c1_32] : memref<32x256xbf16, #tpu.memory_space<vmem>>, vector<32x214xbf16>
    tpu.vector_store %arg15[%c0_31, %c1_32], %54 {strides = array<i32>} : memref<32x256xbf16, #tpu.memory_space<vmem>>, vector<32x214xbf16>,
    %cst_33 = arith.constant 0.000000e+00 : bf16
    %56 = vector.broadcast %cst_33 : bf16 to vector<32x1xbf16>
    %c0_34 = arith.constant 0 : index
    %c215 = arith.constant 215 : index
    %57 = vector.load %arg15[%c0_34, %c215] : memref<32x256xbf16, #tpu.memory_space<vmem>>, vector<32x1xbf16>
    tpu.vector_store %arg15[%c0_34, %c215], %56 {strides = array<i32>} : memref<32x256xbf16, #tpu.memory_space<vmem>>, vector<32x1xbf16>,
    %c0_35 = arith.constant 0 : index
    %c0_36 = arith.constant 0 : index
    %58 = vector.load %arg15[%c0_35, %c0_36] : memref<32x256xbf16, #tpu.memory_space<vmem>>, vector<32x216xbf16>
    %59 = vector.extract_strided_slice %58 {offsets = [0, 0], sizes = [32, 178], strides = [1, 1]} : vector<32x216xbf16> to vector<32x178xbf16>
    %c0_37 = arith.constant 0 : index
    %c0_38 = arith.constant 0 : index
    %60 = vector.load %arg14[%c0_37, %c0_38] : memref<288x256xbf16, #tpu.memory_space<vmem>>, vector<32x178xbf16>
    tpu.vector_store %arg14[%c0_37, %c0_38], %59 {strides = array<i32>} : memref<288x256xbf16, #tpu.memory_space<vmem>>, vector<32x178xbf16>,
    %61 = vector.extract_strided_slice %58 {offsets = [0, 1], sizes = [32, 178], strides = [1, 1]} : vector<32x216xbf16> to vector<32x178xbf16>
    %c32_39 = arith.constant 32 : index
    %c0_40 = arith.constant 0 : index
    %62 = vector.load %arg14[%c32_39, %c0_40] : memref<288x256xbf16, #tpu.memory_space<vmem>>, vector<32x178xbf16>
    tpu.vector_store %arg14[%c32_39, %c0_40], %61 {strides = array<i32>} : memref<288x256xbf16, #tpu.memory_space<vmem>>, vector<32x178xbf16>,
    %63 = vector.extract_strided_slice %58 {offsets = [0, 2], sizes = [32, 178], strides = [1, 1]} : vector<32x216xbf16> to vector<32x178xbf16>
    %c64_41 = arith.constant 64 : index
    %c0_42 = arith.constant 0 : index
    %64 = vector.load %arg14[%c64_41, %c0_42] : memref<288x256xbf16, #tpu.memory_space<vmem>>, vector<32x178xbf16>
    tpu.vector_store %arg14[%c64_41, %c0_42], %63 {strides = array<i32>} : memref<288x256xbf16, #tpu.memory_space<vmem>>, vector<32x178xbf16>,
    %65 = vector.extract_strided_slice %58 {offsets = [0, 18], sizes = [32, 178], strides = [1, 1]} : vector<32x216xbf16> to vector<32x178xbf16>
    %c96_43 = arith.constant 96 : index
    %c0_44 = arith.constant 0 : index
    %66 = vector.load %arg14[%c96_43, %c0_44] : memref<288x256xbf16, #tpu.memory_space<vmem>>, vector<32x178xbf16>
    tpu.vector_store %arg14[%c96_43, %c0_44], %65 {strides = array<i32>} : memref<288x256xbf16, #tpu.memory_space<vmem>>, vector<32x178xbf16>,
    %67 = vector.extract_strided_slice %58 {offsets = [0, 19], sizes = [32, 178], strides = [1, 1]} : vector<32x216xbf16> to vector<32x178xbf16>
    %c128_45 = arith.constant 128 : index
    %c0_46 = arith.constant 0 : index
    %68 = vector.load %arg14[%c128_45, %c0_46] : memref<288x256xbf16, #tpu.memory_space<vmem>>, vector<32x178xbf16>
    tpu.vector_store %arg14[%c128_45, %c0_46], %67 {strides = array<i32>} : memref<288x256xbf16, #tpu.memory_space<vmem>>, vector<32x178xbf16>,
    %69 = vector.extract_strided_slice %58 {offsets = [0, 20], sizes = [32, 178], strides = [1, 1]} : vector<32x216xbf16> to vector<32x178xbf16>
    %c160 = arith.constant 160 : index
    %c0_47 = arith.constant 0 : index
    %70 = vector.load %arg14[%c160, %c0_47] : memref<288x256xbf16, #tpu.memory_space<vmem>>, vector<32x178xbf16>
    tpu.vector_store %arg14[%c160, %c0_47], %69 {strides = array<i32>} : memref<288x256xbf16, #tpu.memory_space<vmem>>, vector<32x178xbf16>,
    %71 = vector.extract_strided_slice %58 {offsets = [0, 36], sizes = [32, 178], strides = [1, 1]} : vector<32x216xbf16> to vector<32x178xbf16>
    %c192 = arith.constant 192 : index
    %c0_48 = arith.constant 0 : index
    %72 = vector.load %arg14[%c192, %c0_48] : memref<288x256xbf16, #tpu.memory_space<vmem>>, vector<32x178xbf16>
    tpu.vector_store %arg14[%c192, %c0_48], %71 {strides = array<i32>} : memref<288x256xbf16, #tpu.memory_space<vmem>>, vector<32x178xbf16>,
    %73 = vector.extract_strided_slice %58 {offsets = [0, 37], sizes = [32, 178], strides = [1, 1]} : vector<32x216xbf16> to vector<32x178xbf16>
    %c224 = arith.constant 224 : index
    %c0_49 = arith.constant 0 : index
    %74 = vector.load %arg14[%c224, %c0_49] : memref<288x256xbf16, #tpu.memory_space<vmem>>, vector<32x178xbf16>
    tpu.vector_store %arg14[%c224, %c0_49], %73 {strides = array<i32>} : memref<288x256xbf16, #tpu.memory_space<vmem>>, vector<32x178xbf16>,
    %75 = vector.extract_strided_slice %58 {offsets = [0, 38], sizes = [32, 178], strides = [1, 1]} : vector<32x216xbf16> to vector<32x178xbf16>
    %c256 = arith.constant 256 : index
    %c0_50 = arith.constant 0 : index
    %76 = vector.load %arg14[%c256, %c0_50] : memref<288x256xbf16, #tpu.memory_space<vmem>>, vector<32x178xbf16>
    tpu.vector_store %arg14[%c256, %c0_50], %75 {strides = array<i32>} : memref<288x256xbf16, #tpu.memory_space<vmem>>, vector<32x178xbf16>,
    %c0_51 = arith.constant 0 : index
    %c0_52 = arith.constant 0 : index
    %77 = vector.load %arg6[%c0_51, %c0_52] : memref<32x288xbf16, #tpu.memory_space<vmem>>, vector<32x288xbf16>
    %c0_53 = arith.constant 0 : index
    %c0_54 = arith.constant 0 : index
    %78 = vector.load %arg14[%c0_53, %c0_54] : memref<288x256xbf16, #tpu.memory_space<vmem>>, vector<288x178xbf16>
    %cst_55 = arith.constant dense<0.000000e+00> : vector<32x178xf32>
    %79 = tpu.matmul %77, %78, %cst_55 {dimension_numbers = #tpu.dot_dimension_numbers<[1], [0], [0], [1], [0, 0, 1, 1], [], []>} : vector<32x288xbf16>, vector<288x178xbf16>, vector<32x178xf32> -> vector<32x178xf32>
    %c0_56 = arith.constant 0 : index
    %c0_57 = arith.constant 0 : index
    %80 = vector.load %arg7[%c0_56, %c0_57] : memref<32x1xf32, #tpu.memory_space<vmem>>, vector<32x1xf32>
    %81 = vector.broadcast %80 : vector<32x1xf32> to vector<32x178xf32>
    %82 = arith.addf %79, %81 : vector<32x178xf32>
    %cst_58 = arith.constant 0.000000e+00 : f32
    %83 = vector.broadcast %cst_58 : f32 to vector<32x178xf32>
    %84 = arith.maximumf %82, %83 : vector<32x178xf32>
    %cst_59 = arith.constant 1.000000e+00 : f32
    %85 = arith.subf %1, %cst_59 : f32
    %86 = vector.extract_strided_slice %8 {offsets = [0, 0], sizes = [1, 178], strides = [1, 1]} : vector<1x214xf32> to vector<1x178xf32>
    %87 = vector.broadcast %85 : f32 to vector<1x178xf32>
    %88 = arith.addf %87, %86 : vector<1x178xf32>
    %89 = vector.extract_strided_slice %7 {offsets = [0, 0], sizes = [1, 178], strides = [1, 1]} : vector<1x214xf32> to vector<1x178xf32>
    %cst_60 = arith.constant 0.000000e+00 : f32
    %90 = vector.broadcast %cst_60 : f32 to vector<1x178xf32>
    %91 = arith.cmpf oge, %88, %90 : vector<1x178xf32>
    %cst_61 = arith.constant 1.500000e+01 : f32
    %92 = vector.broadcast %cst_61 : f32 to vector<1x178xf32>
    %93 = arith.cmpf ole, %88, %92 : vector<1x178xf32>
    %94 = arith.andi %91, %93 : vector<1x178xi1>
    %cst_62 = arith.constant 1.000000e+00 : f32
    %cst_63 = arith.constant 0.000000e+00 : f32
    %95 = vector.broadcast %cst_62 : f32 to vector<1x178xf32>
    %96 = vector.broadcast %cst_63 : f32 to vector<1x178xf32>
    %97 = arith.select %94, %95, %96 : vector<1x178xi1>, vector<1x178xf32>
    %98 = arith.mulf %89, %97 : vector<1x178xf32>
    %cst_64 = arith.constant 0.000000e+00 : bf16
    %99 = vector.broadcast %cst_64 : bf16 to vector<32x1xbf16>
    %c0_65 = arith.constant 0 : index
    %c0_66 = arith.constant 0 : index
    %100 = vector.load %arg15[%c0_65, %c0_66] : memref<32x256xbf16, #tpu.memory_space<vmem>>, vector<32x1xbf16>
    tpu.vector_store %arg15[%c0_65, %c0_66], %99 {strides = array<i32>} : memref<32x256xbf16, #tpu.memory_space<vmem>>, vector<32x1xbf16>,
    %101 = vector.broadcast %98 : vector<1x178xf32> to vector<32x178xf32>
    %102 = arith.mulf %84, %101 : vector<32x178xf32>
    %103 = arith.truncf %102 : vector<32x178xf32> to vector<32x178xbf16>
    %c0_67 = arith.constant 0 : index
    %c1_68 = arith.constant 1 : index
    %104 = vector.load %arg15[%c0_67, %c1_68] : memref<32x256xbf16, #tpu.memory_space<vmem>>, vector<32x178xbf16>
    tpu.vector_store %arg15[%c0_67, %c1_68], %103 {strides = array<i32>} : memref<32x256xbf16, #tpu.memory_space<vmem>>, vector<32x178xbf16>,
    %cst_69 = arith.constant 0.000000e+00 : bf16
    %105 = vector.broadcast %cst_69 : bf16 to vector<32x1xbf16>
    %c0_70 = arith.constant 0 : index
    %c179 = arith.constant 179 : index
    %106 = vector.load %arg15[%c0_70, %c179] : memref<32x256xbf16, #tpu.memory_space<vmem>>, vector<32x1xbf16>
    tpu.vector_store %arg15[%c0_70, %c179], %105 {strides = array<i32>} : memref<32x256xbf16, #tpu.memory_space<vmem>>, vector<32x1xbf16>,
    %c0_71 = arith.constant 0 : index
    %c0_72 = arith.constant 0 : index
    %107 = vector.load %arg15[%c0_71, %c0_72] : memref<32x256xbf16, #tpu.memory_space<vmem>>, vector<32x180xbf16>
    %108 = vector.extract_strided_slice %107 {offsets = [0, 0], sizes = [32, 142], strides = [1, 1]} : vector<32x180xbf16> to vector<32x142xbf16>
    %c0_73 = arith.constant 0 : index
    %c0_74 = arith.constant 0 : index
    %109 = vector.load %arg14[%c0_73, %c0_74] : memref<288x256xbf16, #tpu.memory_space<vmem>>, vector<32x142xbf16>
    tpu.vector_store %arg14[%c0_73, %c0_74], %108 {strides = array<i32>} : memref<288x256xbf16, #tpu.memory_space<vmem>>, vector<32x142xbf16>,
    %110 = vector.extract_strided_slice %107 {offsets = [0, 1], sizes = [32, 142], strides = [1, 1]} : vector<32x180xbf16> to vector<32x142xbf16>
    %c32_75 = arith.constant 32 : index
    %c0_76 = arith.constant 0 : index
    %111 = vector.load %arg14[%c32_75, %c0_76] : memref<288x256xbf16, #tpu.memory_space<vmem>>, vector<32x142xbf16>
    tpu.vector_store %arg14[%c32_75, %c0_76], %110 {strides = array<i32>} : memref<288x256xbf16, #tpu.memory_space<vmem>>, vector<32x142xbf16>,
    %112 = vector.extract_strided_slice %107 {offsets = [0, 2], sizes = [32, 142], strides = [1, 1]} : vector<32x180xbf16> to vector<32x142xbf16>
    %c64_77 = arith.constant 64 : index
    %c0_78 = arith.constant 0 : index
    %113 = vector.load %arg14[%c64_77, %c0_78] : memref<288x256xbf16, #tpu.memory_space<vmem>>, vector<32x142xbf16>
    tpu.vector_store %arg14[%c64_77, %c0_78], %112 {strides = array<i32>} : memref<288x256xbf16, #tpu.memory_space<vmem>>, vector<32x142xbf16>,
    %114 = vector.extract_strided_slice %107 {offsets = [0, 18], sizes = [32, 142], strides = [1, 1]} : vector<32x180xbf16> to vector<32x142xbf16>
    %c96_79 = arith.constant 96 : index
    %c0_80 = arith.constant 0 : index
    %115 = vector.load %arg14[%c96_79, %c0_80] : memref<288x256xbf16, #tpu.memory_space<vmem>>, vector<32x142xbf16>
    tpu.vector_store %arg14[%c96_79, %c0_80], %114 {strides = array<i32>} : memref<288x256xbf16, #tpu.memory_space<vmem>>, vector<32x142xbf16>,
    %116 = vector.extract_strided_slice %107 {offsets = [0, 19], sizes = [32, 142], strides = [1, 1]} : vector<32x180xbf16> to vector<32x142xbf16>
    %c128_81 = arith.constant 128 : index
    %c0_82 = arith.constant 0 : index
    %117 = vector.load %arg14[%c128_81, %c0_82] : memref<288x256xbf16, #tpu.memory_space<vmem>>, vector<32x142xbf16>
    tpu.vector_store %arg14[%c128_81, %c0_82], %116 {strides = array<i32>} : memref<288x256xbf16, #tpu.memory_space<vmem>>, vector<32x142xbf16>,
    %118 = vector.extract_strided_slice %107 {offsets = [0, 20], sizes = [32, 142], strides = [1, 1]} : vector<32x180xbf16> to vector<32x142xbf16>
    %c160_83 = arith.constant 160 : index
    %c0_84 = arith.constant 0 : index
    %119 = vector.load %arg14[%c160_83, %c0_84] : memref<288x256xbf16, #tpu.memory_space<vmem>>, vector<32x142xbf16>
    tpu.vector_store %arg14[%c160_83, %c0_84], %118 {strides = array<i32>} : memref<288x256xbf16, #tpu.memory_space<vmem>>, vector<32x142xbf16>,
    %120 = vector.extract_strided_slice %107 {offsets = [0, 36], sizes = [32, 142], strides = [1, 1]} : vector<32x180xbf16> to vector<32x142xbf16>
    %c192_85 = arith.constant 192 : index
    %c0_86 = arith.constant 0 : index
    %121 = vector.load %arg14[%c192_85, %c0_86] : memref<288x256xbf16, #tpu.memory_space<vmem>>, vector<32x142xbf16>
    tpu.vector_store %arg14[%c192_85, %c0_86], %120 {strides = array<i32>} : memref<288x256xbf16, #tpu.memory_space<vmem>>, vector<32x142xbf16>,
    %122 = vector.extract_strided_slice %107 {offsets = [0, 37], sizes = [32, 142], strides = [1, 1]} : vector<32x180xbf16> to vector<32x142xbf16>
    %c224_87 = arith.constant 224 : index
    %c0_88 = arith.constant 0 : index
    %123 = vector.load %arg14[%c224_87, %c0_88] : memref<288x256xbf16, #tpu.memory_space<vmem>>, vector<32x142xbf16>
    tpu.vector_store %arg14[%c224_87, %c0_88], %122 {strides = array<i32>} : memref<288x256xbf16, #tpu.memory_space<vmem>>, vector<32x142xbf16>,
    %124 = vector.extract_strided_slice %107 {offsets = [0, 38], sizes = [32, 142], strides = [1, 1]} : vector<32x180xbf16> to vector<32x142xbf16>
    %c256_89 = arith.constant 256 : index
    %c0_90 = arith.constant 0 : index
    %125 = vector.load %arg14[%c256_89, %c0_90] : memref<288x256xbf16, #tpu.memory_space<vmem>>, vector<32x142xbf16>
    tpu.vector_store %arg14[%c256_89, %c0_90], %124 {strides = array<i32>} : memref<288x256xbf16, #tpu.memory_space<vmem>>, vector<32x142xbf16>,
    %c0_91 = arith.constant 0 : index
    %c0_92 = arith.constant 0 : index
    %126 = vector.load %arg8[%c0_91, %c0_92] : memref<32x288xbf16, #tpu.memory_space<vmem>>, vector<32x288xbf16>
    %c0_93 = arith.constant 0 : index
    %c0_94 = arith.constant 0 : index
    %127 = vector.load %arg14[%c0_93, %c0_94] : memref<288x256xbf16, #tpu.memory_space<vmem>>, vector<288x142xbf16>
    %cst_95 = arith.constant dense<0.000000e+00> : vector<32x142xf32>
    %128 = tpu.matmul %126, %127, %cst_95 {dimension_numbers = #tpu.dot_dimension_numbers<[1], [0], [0], [1], [0, 0, 1, 1], [], []>} : vector<32x288xbf16>, vector<288x142xbf16>, vector<32x142xf32> -> vector<32x142xf32>
    %c0_96 = arith.constant 0 : index
    %c0_97 = arith.constant 0 : index
    %129 = vector.load %arg9[%c0_96, %c0_97] : memref<32x1xf32, #tpu.memory_space<vmem>>, vector<32x1xf32>
    %130 = vector.broadcast %129 : vector<32x1xf32> to vector<32x142xf32>
    %131 = arith.addf %128, %130 : vector<32x142xf32>
    %cst_98 = arith.constant 0.000000e+00 : f32
    %132 = vector.broadcast %cst_98 : f32 to vector<32x142xf32>
    %133 = arith.maximumf %131, %132 : vector<32x142xf32>
    %c0_99 = arith.constant 0 : index
    %c0_100 = arith.constant 0 : index
    %134 = vector.load %arg10[%c0_99, %c0_100] : memref<16x32xbf16, #tpu.memory_space<vmem>>, vector<16x32xbf16>
    %135 = arith.truncf %133 : vector<32x142xf32> to vector<32x142xbf16>
    %cst_101 = arith.constant dense<0.000000e+00> : vector<16x142xf32>
    %136 = tpu.matmul %134, %135, %cst_101 {dimension_numbers = #tpu.dot_dimension_numbers<[1], [0], [0], [1], [0, 0, 1, 1], [], []>} : vector<16x32xbf16>, vector<32x142xbf16>, vector<16x142xf32> -> vector<16x142xf32>
    %c0_102 = arith.constant 0 : index
    %c0_103 = arith.constant 0 : index
    %137 = vector.load %arg11[%c0_102, %c0_103] : memref<16x1xf32, #tpu.memory_space<vmem>>, vector<16x1xf32>
    %138 = vector.broadcast %137 : vector<16x1xf32> to vector<16x142xf32>
    %139 = arith.addf %136, %138 : vector<16x142xf32>
    %140 = vector.extract_strided_slice %139 {offsets = [0, 0], sizes = [3, 142], strides = [1, 1]} : vector<16x142xf32> to vector<3x142xf32>
    %141 = vector.extract_strided_slice %139 {offsets = [3, 0], sizes = [3, 142], strides = [1, 1]} : vector<16x142xf32> to vector<3x142xf32>
    %142 = vector.extract_strided_slice %139 {offsets = [6, 0], sizes = [3, 142], strides = [1, 1]} : vector<16x142xf32> to vector<3x142xf32>
    %143 = vector.extract_strided_slice %139 {offsets = [9, 0], sizes = [3, 142], strides = [1, 1]} : vector<16x142xf32> to vector<3x142xf32>
    %cst_104 = arith.constant 4.13516665 : f32
    %144 = vector.broadcast %cst_104 : f32 to vector<3x142xf32>
    %145 = arith.minimumf %143, %144 : vector<3x142xf32>
    %146 = vector.extract_strided_slice %139 {offsets = [12, 0], sizes = [3, 142], strides = [1, 1]} : vector<16x142xf32> to vector<3x142xf32>
    %cst_105 = arith.constant 4.13516665 : f32
    %147 = vector.broadcast %cst_105 : f32 to vector<3x142xf32>
    %148 = arith.minimumf %146, %147 : vector<3x142xf32>
    %149 = vector.extract_strided_slice %9 {offsets = [0, 0], sizes = [1, 142], strides = [1, 1]} : vector<1x214xf32> to vector<1x142xf32>
    %150 = vector.extract_strided_slice %8 {offsets = [0, 0], sizes = [1, 142], strides = [1, 1]} : vector<1x214xf32> to vector<1x142xf32>
    %151 = vector.broadcast %1 : f32 to vector<1x142xf32>
    %152 = arith.addf %151, %150 : vector<1x142xf32>
    %cst_106 = arith.constant 1.500000e+00 : f32
    %153 = vector.broadcast %cst_106 : f32 to vector<1x1xf32>
    %cst_107 = arith.constant 3.500000e+00 : f32
    %154 = vector.broadcast %cst_107 : f32 to vector<1x1xf32>
    %cst_108 = arith.constant 7.500000e+00 : f32
    %155 = vector.broadcast %cst_108 : f32 to vector<1x1xf32>
    %156 = tpu.concatenate %153, %154, %155 in 0 : vector<1x1xf32>, vector<1x1xf32>, vector<1x1xf32> -> vector<3x1xf32>
    %157 = vector.broadcast %149 : vector<1x142xf32> to vector<3x142xf32>
    %158 = vector.broadcast %156 : vector<3x1xf32> to vector<3x142xf32>
    %159 = arith.subf %157, %158 : vector<3x142xf32>
    %160 = vector.broadcast %152 : vector<1x142xf32> to vector<3x142xf32>
    %161 = vector.broadcast %156 : vector<3x1xf32> to vector<3x142xf32>
    %162 = arith.subf %160, %161 : vector<3x142xf32>
    %163 = vector.broadcast %149 : vector<1x142xf32> to vector<3x142xf32>
    %164 = vector.broadcast %156 : vector<3x1xf32> to vector<3x142xf32>
    %165 = arith.addf %163, %164 : vector<3x142xf32>
    %166 = vector.broadcast %152 : vector<1x142xf32> to vector<3x142xf32>
    %167 = vector.broadcast %156 : vector<3x1xf32> to vector<3x142xf32>
    %168 = arith.addf %166, %167 : vector<3x142xf32>
    %169 = arith.subf %165, %159 : vector<3x142xf32>
    %cst_109 = arith.constant 1.000000e+00 : f32
    %170 = vector.broadcast %cst_109 : f32 to vector<3x142xf32>
    %171 = arith.addf %169, %170 : vector<3x142xf32>
    %172 = arith.subf %168, %162 : vector<3x142xf32>
    %cst_110 = arith.constant 1.000000e+00 : f32
    %173 = vector.broadcast %cst_110 : f32 to vector<3x142xf32>
    %174 = arith.addf %172, %173 : vector<3x142xf32>
    %cst_111 = arith.constant 5.000000e-01 : f32
    %175 = vector.broadcast %cst_111 : f32 to vector<3x142xf32>
    %176 = arith.mulf %175, %171 : vector<3x142xf32>
    %177 = arith.addf %159, %176 : vector<3x142xf32>
    %cst_112 = arith.constant 5.000000e-01 : f32
    %178 = vector.broadcast %cst_112 : f32 to vector<3x142xf32>
    %179 = arith.mulf %178, %174 : vector<3x142xf32>
    %180 = arith.addf %162, %179 : vector<3x142xf32>
    %181 = arith.mulf %141, %171 : vector<3x142xf32>
    %182 = arith.addf %181, %177 : vector<3x142xf32>
    %183 = arith.mulf %142, %174 : vector<3x142xf32>
    %184 = arith.addf %183, %180 : vector<3x142xf32>
    %185 = math.exp %145 : vector<3x142xf32>
    %186 = arith.mulf %185, %171 : vector<3x142xf32>
    %187 = math.exp %148 : vector<3x142xf32>
    %188 = arith.mulf %187, %174 : vector<3x142xf32>
    %cst_113 = arith.constant 5.000000e-01 : f32
    %189 = vector.broadcast %cst_113 : f32 to vector<3x142xf32>
    %190 = arith.mulf %189, %186 : vector<3x142xf32>
    %191 = arith.subf %182, %190 : vector<3x142xf32>
    %cst_114 = arith.constant 1.000000e+00 : f32
    %192 = arith.subf %5, %cst_114 : f32
    %cst_115 = arith.constant 0.000000e+00 : f32
    %193 = vector.broadcast %cst_115 : f32 to vector<3x142xf32>
    %194 = arith.maximumf %193, %191 : vector<3x142xf32>
    %195 = vector.broadcast %192 : f32 to vector<3x142xf32>
    %196 = arith.minimumf %195, %194 : vector<3x142xf32>
    %cst_116 = arith.constant 5.000000e-01 : f32
    %197 = vector.broadcast %cst_116 : f32 to vector<3x142xf32>
    %198 = arith.mulf %197, %188 : vector<3x142xf32>
    %199 = arith.subf %184, %198 : vector<3x142xf32>
    %cst_117 = arith.constant 1.000000e+00 : f32
    %200 = arith.subf %3, %cst_117 : f32
    %cst_118 = arith.constant 0.000000e+00 : f32
    %201 = vector.broadcast %cst_118 : f32 to vector<3x142xf32>
    %202 = arith.maximumf %201, %199 : vector<3x142xf32>
    %203 = vector.broadcast %200 : f32 to vector<3x142xf32>
    %204 = arith.minimumf %203, %202 : vector<3x142xf32>
    %cst_119 = arith.constant 5.000000e-01 : f32
    %205 = vector.broadcast %cst_119 : f32 to vector<3x142xf32>
    %206 = arith.mulf %205, %186 : vector<3x142xf32>
    %207 = arith.addf %182, %206 : vector<3x142xf32>
    %cst_120 = arith.constant 1.000000e+00 : f32
    %208 = vector.broadcast %cst_120 : f32 to vector<3x142xf32>
    %209 = arith.subf %207, %208 : vector<3x142xf32>
    %cst_121 = arith.constant 1.000000e+00 : f32
    %210 = arith.subf %5, %cst_121 : f32
    %cst_122 = arith.constant 0.000000e+00 : f32
    %211 = vector.broadcast %cst_122 : f32 to vector<3x142xf32>
    %212 = arith.maximumf %211, %209 : vector<3x142xf32>
    %213 = vector.broadcast %210 : f32 to vector<3x142xf32>
    %214 = arith.minimumf %213, %212 : vector<3x142xf32>
    %cst_123 = arith.constant 5.000000e-01 : f32
    %215 = vector.broadcast %cst_123 : f32 to vector<3x142xf32>
    %216 = arith.mulf %215, %188 : vector<3x142xf32>
    %217 = arith.addf %184, %216 : vector<3x142xf32>
    %cst_124 = arith.constant 1.000000e+00 : f32
    %218 = vector.broadcast %cst_124 : f32 to vector<3x142xf32>
    %219 = arith.subf %217, %218 : vector<3x142xf32>
    %cst_125 = arith.constant 1.000000e+00 : f32
    %220 = arith.subf %3, %cst_125 : f32
    %cst_126 = arith.constant 0.000000e+00 : f32
    %221 = vector.broadcast %cst_126 : f32 to vector<3x142xf32>
    %222 = arith.maximumf %221, %219 : vector<3x142xf32>
    %223 = vector.broadcast %220 : f32 to vector<3x142xf32>
    %224 = arith.minimumf %223, %222 : vector<3x142xf32>
    %225 = vector.extract_strided_slice %7 {offsets = [0, 0], sizes = [1, 142], strides = [1, 1]} : vector<1x214xf32> to vector<1x142xf32>
    %cst_127 = arith.constant 0.000000e+00 : f32
    %226 = vector.broadcast %cst_127 : f32 to vector<1x142xf32>
    %227 = arith.cmpf ogt, %225, %226 : vector<1x142xf32>
    %cst_128 = arith.constant 1.500000e+01 : f32
    %228 = vector.broadcast %cst_128 : f32 to vector<1x142xf32>
    %229 = arith.cmpf ole, %152, %228 : vector<1x142xf32>
    %230 = arith.andi %227, %229 : vector<1x142xi1>
    %231 = arith.negf %140 : vector<3x142xf32>
    %232 = math.exp %231 : vector<3x142xf32>
    %cst_129 = arith.constant 1.000000e+00 : f32
    %233 = vector.broadcast %cst_129 : f32 to vector<3x142xf32>
    %234 = arith.addf %233, %232 : vector<3x142xf32>
    %235 = arith.divf %233, %234 : vector<3x142xf32>
    %cst_130 = arith.constant -1.000000e+30 : f32
    %236 = vector.shape_cast %230 : vector<1x142xi1> to vector<1x142xi1>
    %237 = vector.broadcast %236 : vector<1x142xi1> to vector<3x142xi1>
    %238 = vector.broadcast %cst_130 : f32 to vector<3x142xf32>
    %239 = arith.select %237, %235, %238 : vector<3x142xi1>, vector<3x142xf32>
    %cst_131 = arith.constant 0.000000e+00 : f32
    %240 = vector.broadcast %cst_131 : f32 to vector<1x142xf32>
    %241 = tpu.concatenate %239, %196, %204, %214, %224, %240 in 0 : vector<3x142xf32>, vector<3x142xf32>, vector<3x142xf32>, vector<3x142xf32>, vector<3x142xf32>, vector<1x142xf32> -> vector<16x142xf32>
    %cst_132 = arith.constant -1.000000e+30 : f32
    %242 = vector.broadcast %cst_132 : f32 to vector<16x114xf32>
    %243 = tpu.concatenate %241, %242 in 1 : vector<16x142xf32>, vector<16x114xf32> -> vector<16x256xf32>
    %c0_133 = arith.constant 0 : index
    %c0_134 = arith.constant 0 : index
    %c0_135 = arith.constant 0 : index
    %c0_136 = arith.constant 0 : index
    %244 = vector.load %arg13[%c0_133, %c0_134, %c0_135, %c0_136] : memref<1x1x16x256xf32, #tpu.memory_space<vmem>>, vector<1x1x16x256xf32>
    %245 = vector.shape_cast %244 : vector<1x1x16x256xf32> to vector<16x256xf32>
    %246 = vector.shape_cast %243 : vector<16x256xf32> to vector<1x1x16x256xf32>
    tpu.vector_store %arg13[%c0_133, %c0_134, %c0_135, %c0_136], %246 {strides = array<i32>} : memref<1x1x16x256xf32, #tpu.memory_space<vmem>>, vector<1x1x16x256xf32>,
    return
  }
  func.func @transform_0(%arg0: i32, %arg1: i32) -> (i32, i32, i32, i32) {
    %c0_i32 = arith.constant 0 : i32
    %c0_i32_0 = arith.constant 0 : i32
    %c0_i32_1 = arith.constant 0 : i32
    return %arg0, %arg1, %c0_i32, %c0_i32_0 : i32, i32, i32, i32
  }
  func.func @transform_1(%arg0: i32, %arg1: i32) -> (i32, i32) {
    %c0_i32 = arith.constant 0 : i32
    %c0_i32_0 = arith.constant 0 : i32
    %c0_i32_1 = arith.constant 0 : i32
    return %c0_i32, %c0_i32_0 : i32, i32
  }
  func.func @transform_2(%arg0: i32, %arg1: i32) -> (i32, i32) {
    %c0_i32 = arith.constant 0 : i32
    %c0_i32_0 = arith.constant 0 : i32
    %c0_i32_1 = arith.constant 0 : i32
    return %c0_i32, %c0_i32_0 : i32, i32
  }
  func.func @transform_3(%arg0: i32, %arg1: i32) -> (i32, i32) {
    %c0_i32 = arith.constant 0 : i32
    %c0_i32_0 = arith.constant 0 : i32
    %c0_i32_1 = arith.constant 0 : i32
    return %c0_i32, %c0_i32_0 : i32, i32
  }
  func.func @transform_4(%arg0: i32, %arg1: i32) -> (i32, i32) {
    %c0_i32 = arith.constant 0 : i32
    %c0_i32_0 = arith.constant 0 : i32
    %c0_i32_1 = arith.constant 0 : i32
    return %c0_i32, %c0_i32_0 : i32, i32
  }
  func.func @transform_5(%arg0: i32, %arg1: i32) -> (i32, i32) {
    %c0_i32 = arith.constant 0 : i32
    %c0_i32_0 = arith.constant 0 : i32
    %c0_i32_1 = arith.constant 0 : i32
    return %c0_i32, %c0_i32_0 : i32, i32
  }
  func.func @transform_6(%arg0: i32, %arg1: i32) -> (i32, i32) {
    %c0_i32 = arith.constant 0 : i32
    %c0_i32_0 = arith.constant 0 : i32
    %c0_i32_1 = arith.constant 0 : i32
    return %c0_i32, %c0_i32_0 : i32, i32
  }
  func.func @transform_7(%arg0: i32, %arg1: i32) -> (i32, i32) {
    %c0_i32 = arith.constant 0 : i32
    %c0_i32_0 = arith.constant 0 : i32
    %c0_i32_1 = arith.constant 0 : i32
    return %c0_i32, %c0_i32_0 : i32, i32
  }
  func.func @transform_8(%arg0: i32, %arg1: i32) -> (i32, i32) {
    %c0_i32 = arith.constant 0 : i32
    %c0_i32_0 = arith.constant 0 : i32
    %c0_i32_1 = arith.constant 0 : i32
    return %c0_i32, %c0_i32_0 : i32, i32
  }
  func.func @transform_9(%arg0: i32, %arg1: i32) -> (i32, i32) {
    %c0_i32 = arith.constant 0 : i32
    %c0_i32_0 = arith.constant 0 : i32
    %c0_i32_1 = arith.constant 0 : i32
    return %c0_i32, %c0_i32_0 : i32, i32
  }
  func.func @transform_10(%arg0: i32, %arg1: i32) -> (i32, i32) {
    %c0_i32 = arith.constant 0 : i32
    %c0_i32_0 = arith.constant 0 : i32
    %c0_i32_1 = arith.constant 0 : i32
    return %c0_i32, %c0_i32_0 : i32, i32
  }
  func.func @transform_11(%arg0: i32, %arg1: i32) -> (i32, i32, i32, i32) {
    %c0_i32 = arith.constant 0 : i32
    %c0_i32_0 = arith.constant 0 : i32
    %c0_i32_1 = arith.constant 0 : i32
    return %arg0, %arg1, %c0_i32, %c0_i32_0 : i32, i32, i32, i32
  }
}

</mosaic_0001>

<llo_original>
// kernel: tpu_custom_call.1
$region0: #{tpu_custom_call.1}
  #allocation0 [shape = 'u32[]', space=smem, size = 0x4, offset = 0x4, fixed_abs, tag = 'smem constant byte address 0x4 - core index']
  #allocation1 [shape = 'u32[144,128]{1,0:T(1,128)}', space=vmem, size = 0x12000, scoped, tag = 'internal scratch']
  #allocation2 [shape = 'bf16[288,256]{1,0:T(16,128)(2,1)}', space=vmem, size = 0x24000, scoped, tag = 'scratch operand']
  #allocation3 [shape = 'bf16[32,256]{1,0:T(16,128)(2,1)}', space=vmem, size = 0x4000, scoped, tag = 'scratch operand']
  %s0 = inlined_call_operand.vmem [shape: bf16[2,2,16,252], index: 0, kind: input, shape index: {}]
  %s1 = inlined_call_operand.hbm [shape: f32[3,214], index: 1, kind: input, shape index: {}]
  %s2 = inlined_call_operand.hbm [shape: bf16[32,144], index: 2, kind: input, shape index: {}]
  %s3 = inlined_call_operand.vmem [shape: f32[32,1], index: 3, kind: input, shape index: {}]
  %s4 = inlined_call_operand.vmem [shape: bf16[32,288], index: 4, kind: input, shape index: {}]
  %s5 = inlined_call_operand.vmem [shape: f32[32,1], index: 5, kind: input, shape index: {}]
  %s6 = inlined_call_operand.hbm [shape: bf16[32,288], index: 6, kind: input, shape index: {}]
  %s7 = inlined_call_operand.vmem [shape: f32[32,1], index: 7, kind: input, shape index: {}]
  %s8 = inlined_call_operand.vmem [shape: bf16[16,32], index: 8, kind: input, shape index: {}]
  %s9 = inlined_call_operand.vmem [shape: f32[16,1], index: 9, kind: input, shape index: {}]
  %s10 = inlined_call_operand.vmem [shape: f32[2,2], index: 10, kind: input, shape index: {}]
  %s11 = inlined_call_operand.hbm [shape: f32[2,2,16,256], index: 11, kind: output, shape index: {}]
  %s12 = sld [smem:[#allocation0]]
  $region93: #{tpu_custom_call.1} parent=0
    _
  %s14 = ssub.s32 1, %s12
  %s15 = scalar_select 0, %s14, %s12
  $region1: #{tpu_custom_call.1} parent=0
    #allocation4 [shape = 'u8[4096]{0}', space=vmem, size = 0x1000, scoped, tag = 'input window, operand 1, single buffered']
    #allocation5 [shape = 's32[2]{0}', space=sflag, size = 0x8, scoped, tag = 'scoped memory for tpu_custom_call.1']
    #allocation6 [shape = 's32[2]{0}', space=sflag, size = 0x8, scoped, tag = 'scoped memory for tpu_custom_call.1']
    #allocation7 [shape = 's32[2]{0}', space=sflag, size = 0x8, scoped, tag = 'scoped memory for tpu_custom_call.1']
    #allocation8 [shape = 'u8[16384]{0}', space=vmem, size = 0x4000, scoped, tag = 'input window, operand 2, single buffered']
    #allocation9 [shape = 's32[1]{0}', space=sflag, size = 0x4, scoped, tag = 'scoped memory for tpu_custom_call.1']
    #allocation10 [shape = 'u8[24576]{0}', space=vmem, size = 0x6000, scoped, tag = 'input window, operand 6, single buffered']
    #allocation11 [shape = 'u8[1024]{0}', space=smem, size = 0x400, scoped, tag = 'input window, operand 10, single buffered']
    #allocation12 [shape = 'u8[32768]{0}', space=vmem, size = 0x8000, scoped, tag = 'output window, operand 0']
    %16 = vsyncpa [#allocation5], 0
    %17 = vsyncpa [#allocation9], 0
    %18 = vsyncpa [#allocation7], 0
    %19 = vsyncpa [#allocation6], 0
    %s20 = scalar_lea.sflag [#allocation6], 1
    %21 = vsyncpa %s20, 0
    loop: start=0, step=1, limit=6
    $region2: #{tpu_custom_call.1} parent=1 // loop_pre_header
      _
    $region3: #{tpu_custom_call.1} parent=1 // loop_header
      %s23 = sphi 0, %s27
      %p24 = scmp.ge.s32.totalorder %s23, 6
      %s30 = sphi 0, %s42
      %s31 = sphi 0, %s38
      %s32 = sphi 0, %s30
      %s33 = sphi 0, %s31
      %s34 = sphi 0, %s32
      %s35 = sphi 0, %s33
      %s47 = sphi 0, %s49
      %s50 = sphi 0, %s47
      %s51 = sphi 0, %s50
      %s67 = sphi 0, %s51
      %s71 = sphi 0, %s71
      %s73 = sphi 0, %s71
      %s74 = sphi 0, %s73
      %s88 = sphi 0, %s74
      %s92 = sphi 0, %s92
      %s94 = sphi 0, %s92
      %s95 = sphi 0, %s94
      %s109 = sphi 0, %s95
      %s113 = sphi 0, %s113
      %s115 = sphi 0, %s113
      %s116 = sphi 0, %s115
      %s130 = sphi 0, %s116
      %s134 = sphi 0, %s134
      %s136 = sphi 0, %s134
      %s137 = sphi 0, %s136
      %s151 = sphi 0, %s137
      %s155 = sphi 0, %s155
      %s157 = sphi 0, %s155
      %s158 = sphi 0, %s157
      %s172 = sphi 0, %s158
      %s176 = sphi 0, %s176
      %s178 = sphi 0, %s176
      %s179 = sphi 0, %s178
      %s193 = sphi 0, %s179
      %s197 = sphi 0, %s197
      %s199 = sphi 0, %s197
      %s200 = sphi 0, %s199
      %s214 = sphi 0, %s200
      %s218 = sphi 0, %s218
      %s220 = sphi 0, %s218
      %s221 = sphi 0, %s220
      %s235 = sphi 0, %s221
      %s239 = sphi 0, %s239
      %s241 = sphi 0, %s239
      %s242 = sphi 0, %s241
      %s256 = sphi 0, %s242
      %s260 = sphi 0, %s260
      %s262 = sphi 0, %s260
      %s263 = sphi 0, %s262
      %s277 = sphi 0, %s263
      %s285 = sphi 0, %s287
      %s288 = sphi 0, %s285
      %s289 = sphi 0, %s288
      %s305 = sphi 0, %s289
    $region4: #{tpu_custom_call.1} parent=1 // loop_header_branch
      %26 = sbr.rel (%p24) target = $region8
    $region5: #{tpu_custom_call.1} parent=1 // loop_body
      %s28 = ssub.s32 %s23, 1
      %s29 = ssub.s32 %s23, 2
      %s36 = sadd.s32 1, %s31
      %p37 = scmp.ge.s32.totalorder %s36, 2
      %s38 = scalar_select %p37, 0, %s36
      %s39 = sadd.s32 1, %s30
      %s40 = scalar_select %p37, %s39, %s30
      %p41 = scmp.ge.s32.totalorder %s40, 2
      %s42 = scalar_select %p41, 0, %s40
      %s43 = ssub.s32 %s30, %s42
      %s44 = ssub.s32 %s31, %s38
      %s45 = sor.u32 %s43, %s44
      %p46 = scmp.eq.s32.totalorder %s45, 0
      %s48 = sadd.s32 %s47, 1
      %s49 = scalar_select %p46, %s47, %s48
      %p52 = pneg %p46
      %p53 = scmp.eq.s32.totalorder %s23, 3
      %p54 = por %p52, %p53
      %p55 = scmp.ne.s32.totalorder %s47, %s50
      %p56 = scmp.eq.s32.totalorder %s23, 0
      %p57 = por %p55, %p56
      %p58 = scmp.ne.s32.totalorder %s47, %s50
      %p59 = scmp.eq.s32.totalorder %s28, 3
      %p60 = por %p58, %p59
      %p61 = scmp.ne.s32.totalorder %s50, %s51
      %p62 = scmp.eq.s32.totalorder %s28, 0
      %p63 = por %p61, %p62
      %p64 = scmp.ne.s32.totalorder %s50, %s51
      %p65 = scmp.eq.s32.totalorder %s29, 3
      %p66 = por %p64, %p65
      %p68 = scmp.ne.s32.totalorder %s51, %s67
      %p69 = scmp.eq.s32.totalorder %s29, 0
      %p70 = por %p68, %p69
      %s72 = sadd.s32 %s71, 1
      %p75 = scmp.eq.s32.totalorder %s23, 3
      %p76 = scmp.ne.s32.totalorder %s71, %s73
      %p77 = scmp.eq.s32.totalorder %s23, 0
      %p78 = por %p76, %p77
      %p79 = scmp.ne.s32.totalorder %s71, %s73
      %p80 = scmp.eq.s32.totalorder %s28, 3
      %p81 = por %p79, %p80
      %p82 = scmp.ne.s32.totalorder %s73, %s74
      %p83 = scmp.eq.s32.totalorder %s28, 0
      %p84 = por %p82, %p83
      %p85 = scmp.ne.s32.totalorder %s73, %s74
      %p86 = scmp.eq.s32.totalorder %s29, 3
      %p87 = por %p85, %p86
      %p89 = scmp.ne.s32.totalorder %s74, %s88
      %p90 = scmp.eq.s32.totalorder %s29, 0
      %p91 = por %p89, %p90
      %s93 = sadd.s32 %s92, 1
      %p96 = scmp.eq.s32.totalorder %s23, 3
      %p97 = scmp.ne.s32.totalorder %s92, %s94
      %p98 = scmp.eq.s32.totalorder %s23, 0
      %p99 = por %p97, %p98
      %p100 = scmp.ne.s32.totalorder %s92, %s94
      %p101 = scmp.eq.s32.totalorder %s28, 3
      %p102 = por %p100, %p101
      %p103 = scmp.ne.s32.totalorder %s94, %s95
      %p104 = scmp.eq.s32.totalorder %s28, 0
      %p105 = por %p103, %p104
      %p106 = scmp.ne.s32.totalorder %s94, %s95
      %p107 = scmp.eq.s32.totalorder %s29, 3
      %p108 = por %p106, %p107
      %p110 = scmp.ne.s32.totalorder %s95, %s109
      %p111 = scmp.eq.s32.totalorder %s29, 0
      %p112 = por %p110, %p111
      %s114 = sadd.s32 %s113, 1
      %p117 = scmp.eq.s32.totalorder %s23, 3
      %p118 = scmp.ne.s32.totalorder %s113, %s115
      %p119 = scmp.eq.s32.totalorder %s23, 0
      %p120 = por %p118, %p119
      %p121 = scmp.ne.s32.totalorder %s113, %s115
      %p122 = scmp.eq.s32.totalorder %s28, 3
      %p123 = por %p121, %p122
      %p124 = scmp.ne.s32.totalorder %s115, %s116
      %p125 = scmp.eq.s32.totalorder %s28, 0
      %p126 = por %p124, %p125
      %p127 = scmp.ne.s32.totalorder %s115, %s116
      %p128 = scmp.eq.s32.totalorder %s29, 3
      %p129 = por %p127, %p128
      %p131 = scmp.ne.s32.totalorder %s116, %s130
      %p132 = scmp.eq.s32.totalorder %s29, 0
      %p133 = por %p131, %p132
      %s135 = sadd.s32 %s134, 1
      %p138 = scmp.eq.s32.totalorder %s23, 3
      %p139 = scmp.ne.s32.totalorder %s134, %s136
      %p140 = scmp.eq.s32.totalorder %s23, 0
      %p141 = por %p139, %p140
      %p142 = scmp.ne.s32.totalorder %s134, %s136
      %p143 = scmp.eq.s32.totalorder %s28, 3
      %p144 = por %p142, %p143
      %p145 = scmp.ne.s32.totalorder %s136, %s137
      %p146 = scmp.eq.s32.totalorder %s28, 0
      %p147 = por %p145, %p146
      %p148 = scmp.ne.s32.totalorder %s136, %s137
      %p149 = scmp.eq.s32.totalorder %s29, 3
      %p150 = por %p148, %p149
      %p152 = scmp.ne.s32.totalorder %s137, %s151
      %p153 = scmp.eq.s32.totalorder %s29, 0
      %p154 = por %p152, %p153
      %s156 = sadd.s32 %s155, 1
      %p159 = scmp.eq.s32.totalorder %s23, 3
      %p160 = scmp.ne.s32.totalorder %s155, %s157
      %p161 = scmp.eq.s32.totalorder %s23, 0
      %p162 = por %p160, %p161
      %p163 = scmp.ne.s32.totalorder %s155, %s157
      %p164 = scmp.eq.s32.totalorder %s28, 3
      %p165 = por %p163, %p164
      %p166 = scmp.ne.s32.totalorder %s157, %s158
      %p167 = scmp.eq.s32.totalorder %s28, 0
      %p168 = por %p166, %p167
      %p169 = scmp.ne.s32.totalorder %s157, %s158
      %p170 = scmp.eq.s32.totalorder %s29, 3
      %p171 = por %p169, %p170
      %p173 = scmp.ne.s32.totalorder %s158, %s172
      %p174 = scmp.eq.s32.totalorder %s29, 0
      %p175 = por %p173, %p174
      %s177 = sadd.s32 %s176, 1
      %p180 = scmp.eq.s32.totalorder %s23, 3
      %p181 = scmp.ne.s32.totalorder %s176, %s178
      %p182 = scmp.eq.s32.totalorder %s23, 0
      %p183 = por %p181, %p182
      %p184 = scmp.ne.s32.totalorder %s176, %s178
      %p185 = scmp.eq.s32.totalorder %s28, 3
      %p186 = por %p184, %p185
      %p187 = scmp.ne.s32.totalorder %s178, %s179
      %p188 = scmp.eq.s32.totalorder %s28, 0
      %p189 = por %p187, %p188
      %p190 = scmp.ne.s32.totalorder %s178, %s179
      %p191 = scmp.eq.s32.totalorder %s29, 3
      %p192 = por %p190, %p191
      %p194 = scmp.ne.s32.totalorder %s179, %s193
      %p195 = scmp.eq.s32.totalorder %s29, 0
      %p196 = por %p194, %p195
      %s198 = sadd.s32 %s197, 1
      %p201 = scmp.eq.s32.totalorder %s23, 3
      %p202 = scmp.ne.s32.totalorder %s197, %s199
      %p203 = scmp.eq.s32.totalorder %s23, 0
      %p204 = por %p202, %p203
      %p205 = scmp.ne.s32.totalorder %s197, %s199
      %p206 = scmp.eq.s32.totalorder %s28, 3
      %p207 = por %p205, %p206
      %p208 = scmp.ne.s32.totalorder %s199, %s200
      %p209 = scmp.eq.s32.totalorder %s28, 0
      %p210 = por %p208, %p209
      %p211 = scmp.ne.s32.totalorder %s199, %s200
      %p212 = scmp.eq.s32.totalorder %s29, 3
      %p213 = por %p211, %p212
      %p215 = scmp.ne.s32.totalorder %s200, %s214
      %p216 = scmp.eq.s32.totalorder %s29, 0
      %p217 = por %p215, %p216
      %s219 = sadd.s32 %s218, 1
      %p222 = scmp.eq.s32.totalorder %s23, 3
      %p223 = scmp.ne.s32.totalorder %s218, %s220
      %p224 = scmp.eq.s32.totalorder %s23, 0
      %p225 = por %p223, %p224
      %p226 = scmp.ne.s32.totalorder %s218, %s220
      %p227 = scmp.eq.s32.totalorder %s28, 3
      %p228 = por %p226, %p227
      %p229 = scmp.ne.s32.totalorder %s220, %s221
      %p230 = scmp.eq.s32.totalorder %s28, 0
      %p231 = por %p229, %p230
      %p232 = scmp.ne.s32.totalorder %s220, %s221
      %p233 = scmp.eq.s32.totalorder %s29, 3
      %p234 = por %p232, %p233
      %p236 = scmp.ne.s32.totalorder %s221, %s235
      %p237 = scmp.eq.s32.totalorder %s29, 0
      %p238 = por %p236, %p237
      %s240 = sadd.s32 %s239, 1
      %p243 = scmp.eq.s32.totalorder %s23, 3
      %p244 = scmp.ne.s32.totalorder %s239, %s241
      %p245 = scmp.eq.s32.totalorder %s23, 0
      %p246 = por %p244, %p245
      %p247 = scmp.ne.s32.totalorder %s239, %s241
      %p248 = scmp.eq.s32.totalorder %s28, 3
      %p249 = por %p247, %p248
      %p250 = scmp.ne.s32.totalorder %s241, %s242
      %p251 = scmp.eq.s32.totalorder %s28, 0
      %p252 = por %p250, %p251
      %p253 = scmp.ne.s32.totalorder %s241, %s242
      %p254 = scmp.eq.s32.totalorder %s29, 3
      %p255 = por %p253, %p254
      %p257 = scmp.ne.s32.totalorder %s242, %s256
      %p258 = scmp.eq.s32.totalorder %s29, 0
      %p259 = por %p257, %p258
      %s261 = sadd.s32 %s260, 1
      %p264 = scmp.eq.s32.totalorder %s23, 3
      %p265 = scmp.ne.s32.totalorder %s260, %s262
      %p266 = scmp.eq.s32.totalorder %s23, 0
      %p267 = por %p265, %p266
      %p268 = scmp.ne.s32.totalorder %s260, %s262
      %p269 = scmp.eq.s32.totalorder %s28, 3
      %p270 = por %p268, %p269
      %p271 = scmp.ne.s32.totalorder %s262, %s263
      %p272 = scmp.eq.s32.totalorder %s28, 0
      %p273 = por %p271, %p272
      %p274 = scmp.ne.s32.totalorder %s262, %s263
      %p275 = scmp.eq.s32.totalorder %s29, 3
      %p276 = por %p274, %p275
      %p278 = scmp.ne.s32.totalorder %s263, %s277
      %p279 = scmp.eq.s32.totalorder %s29, 0
      %p280 = por %p278, %p279
      %s281 = ssub.s32 %s30, %s42
      %s282 = ssub.s32 %s31, %s38
      %s283 = sor.u32 %s281, %s282
      %p284 = scmp.eq.s32.totalorder %s283, 0
      %s286 = sadd.s32 %s285, 1
      %s287 = scalar_select %p284, %s285, %s286
      %p290 = pneg %p284
      %p291 = scmp.eq.s32.totalorder %s23, 3
      %p292 = por %p290, %p291
      %p293 = scmp.ne.s32.totalorder %s285, %s288
      %p294 = scmp.eq.s32.totalorder %s23, 0
      %p295 = por %p293, %p294
      %p296 = scmp.ne.s32.totalorder %s285, %s288
      %p297 = scmp.eq.s32.totalorder %s28, 3
      %p298 = por %p296, %p297
      %p299 = scmp.ne.s32.totalorder %s288, %s289
      %p300 = scmp.eq.s32.totalorder %s28, 0
      %p301 = por %p299, %p300
      %p302 = scmp.ne.s32.totalorder %s288, %s289
      %p303 = scmp.eq.s32.totalorder %s29, 3
      %p304 = por %p302, %p303
      %p306 = scmp.ne.s32.totalorder %s289, %s305
      %p307 = scmp.eq.s32.totalorder %s29, 0
      %p308 = por %p306, %p307
      %p309 = scmp.le.s32.totalorder 1, %s23
      %p310 = scmp.lt.s32.totalorder %s23, 5
      %p311 = pnand %p309, %p310
      %p312 = pneg %p311
      // Predicated region
      $region9: #{tpu_custom_call.1} parent=5 // pred_check
        _
      $region10: #{tpu_custom_call.1} parent=5 // pred_check_branch
        %314 = sbr.rel (%p311) target = $region12
      $region11: #{tpu_custom_call.1} parent=5 // pred_region
        %s315 = ssub.s32 %s23, 1
        // Predicated region
        $region13: #{tpu_custom_call.1} parent=11 // pred_check
          %p316 = pneg %p84
        $region14: #{tpu_custom_call.1} parent=11 // pred_check_branch
          %318 = sbr.rel (%p316) target = $region16
        $region15: #{tpu_custom_call.1} parent=11 // pred_region
          %s320 = ssub.s32 128, 128
          %321 = vsyncadd [#allocation5], %s320
          %s323 = sshll.u32 [#allocation4], 4
          %s324 = int_to_ptr.vmem [resolvable:$true] %s323
          %326 = dma.hbm_to_vmem [thread:$0]  %s1, 128, %s324, [#allocation5]
        $region16: #{tpu_custom_call.1} parent=11 // pred_fallthru
          _
        // Predicated region
        $region17: #{tpu_custom_call.1} parent=11 // pred_check
          %p327 = pneg %p105
        $region18: #{tpu_custom_call.1} parent=11 // pred_check_branch
          %329 = sbr.rel (%p327) target = $region20
        $region19: #{tpu_custom_call.1} parent=11 // pred_region
          %s331 = ssub.s32 512, 512
          %332 = vsyncadd [#allocation9], %s331
          %s333 = sshll.u32 [#allocation8], 4
          %s334 = int_to_ptr.vmem [resolvable:$true] %s333
          %339 = dma.hbm_to_vmem [thread:$0]  %s2, 512, %s334, [#allocation9], 128, 128, 8
        $region20: #{tpu_custom_call.1} parent=11 // pred_fallthru
          _
        // Predicated region
        $region21: #{tpu_custom_call.1} parent=11 // pred_check
          %p340 = pneg %p126
        $region22: #{tpu_custom_call.1} parent=11 // pred_check_branch
          %342 = sbr.rel (%p340) target = $region24
        $region23: #{tpu_custom_call.1} parent=11 // pred_region
          _
        $region24: #{tpu_custom_call.1} parent=11 // pred_fallthru
          _
        // Predicated region
        $region25: #{tpu_custom_call.1} parent=11 // pred_check
          %p343 = pneg %p147
        $region26: #{tpu_custom_call.1} parent=11 // pred_check_branch
          %345 = sbr.rel (%p343) target = $region28
        $region27: #{tpu_custom_call.1} parent=11 // pred_region
          _
        $region28: #{tpu_custom_call.1} parent=11 // pred_fallthru
          _
        // Predicated region
        $region29: #{tpu_custom_call.1} parent=11 // pred_check
          %p346 = pneg %p168
        $region30: #{tpu_custom_call.1} parent=11 // pred_check_branch
          %348 = sbr.rel (%p346) target = $region32
        $region31: #{tpu_custom_call.1} parent=11 // pred_region
          _
        $region32: #{tpu_custom_call.1} parent=11 // pred_fallthru
          _
        // Predicated region
        $region33: #{tpu_custom_call.1} parent=11 // pred_check
          %p349 = pneg %p189
        $region34: #{tpu_custom_call.1} parent=11 // pred_check_branch
          %351 = sbr.rel (%p349) target = $region36
        $region35: #{tpu_custom_call.1} parent=11 // pred_region
          %s353 = ssub.s32 768, 768
          %354 = vsyncadd [#allocation9], %s353
          %s355 = sshll.u32 [#allocation10], 4
          %s356 = int_to_ptr.vmem [resolvable:$true] %s355
          %361 = dma.hbm_to_vmem [thread:$0]  %s6, 768, %s356, [#allocation9], 192, 192, 12
        $region36: #{tpu_custom_call.1} parent=11 // pred_fallthru
          _
        // Predicated region
        $region37: #{tpu_custom_call.1} parent=11 // pred_check
          %p362 = pneg %p210
        $region38: #{tpu_custom_call.1} parent=11 // pred_check_branch
          %364 = sbr.rel (%p362) target = $region40
        $region39: #{tpu_custom_call.1} parent=11 // pred_region
          _
        $region40: #{tpu_custom_call.1} parent=11 // pred_fallthru
          _
        // Predicated region
        $region41: #{tpu_custom_call.1} parent=11 // pred_check
          %p365 = pneg %p231
        $region42: #{tpu_custom_call.1} parent=11 // pred_check_branch
          %367 = sbr.rel (%p365) target = $region44
        $region43: #{tpu_custom_call.1} parent=11 // pred_region
          _
        $region44: #{tpu_custom_call.1} parent=11 // pred_fallthru
          _
        // Predicated region
        $region45: #{tpu_custom_call.1} parent=11 // pred_check
          %p368 = pneg %p252
        $region46: #{tpu_custom_call.1} parent=11 // pred_check_branch
          %370 = sbr.rel (%p368) target = $region48
        $region47: #{tpu_custom_call.1} parent=11 // pred_region
          _
        $region48: #{tpu_custom_call.1} parent=11 // pred_fallthru
          _
        // Predicated region
        $region49: #{tpu_custom_call.1} parent=11 // pred_check
          %p371 = pneg %p273
        $region50: #{tpu_custom_call.1} parent=11 // pred_check_branch
          %373 = sbr.rel (%p371) target = $region52
        $region51: #{tpu_custom_call.1} parent=11 // pred_region
          %s375 = ssub.s32 32, 32
          %376 = vsyncadd [#allocation7], %s375
          %s378 = sshll.u32 %s10, 4
          %s379 = int_to_ptr.vmem [resolvable:$true] %s378
          %381 = dma.vmem_to_smem %s379, 32, [#allocation11], [#allocation7]
        $region52: #{tpu_custom_call.1} parent=11 // pred_fallthru
          _
      $region12: #{tpu_custom_call.1} parent=5 // pred_fallthru
        _
      %p382 = scmp.lt.s32.totalorder %s23, 4
      // Predicated region
      $region53: #{tpu_custom_call.1} parent=5 // pred_check
        %p383 = pneg %p382
      $region54: #{tpu_custom_call.1} parent=5 // pred_check_branch
        %385 = sbr.rel (%p383) target = $region56
      $region55: #{tpu_custom_call.1} parent=5 // pred_region
        // Predicated region
        $region57: #{tpu_custom_call.1} parent=55 // pred_check
          %p386 = pneg %p57
        $region58: #{tpu_custom_call.1} parent=55 // pred_check_branch
          %388 = sbr.rel (%p386) target = $region60
        $region59: #{tpu_custom_call.1} parent=55 // pred_region
          %p389 = scmp.lt.s32.totalorder %s30, 1
          %s390 = scalar_select %p389, %s30, 1
          %p391 = scmp.lt.s32.totalorder %s31, 1
          %s392 = scalar_select %p391, %s31, 1
          %s393 = smul.addr %s392, 4
          %s394 = smul.addr %s390, 8
          %s395 = sadd.s32 %s393, %s394
          %s396 = smul.addr %s395, 4
          %s397 = scalar_lea.vmem %s0, %s396
        $region60: #{tpu_custom_call.1} parent=55 // pred_fallthru
          _
      $region56: #{tpu_custom_call.1} parent=5 // pred_fallthru
        _
      %p398 = scmp.le.s32.totalorder 1, %s23
      %p399 = scmp.lt.s32.totalorder %s23, 5
      %p400 = pnand %p398, %p399
      %p401 = pneg %p400
      // Predicated region
      $region61: #{tpu_custom_call.1} parent=5 // pred_check
        _
      $region62: #{tpu_custom_call.1} parent=5 // pred_check_branch
        %403 = sbr.rel (%p400) target = $region64
      $region63: #{tpu_custom_call.1} parent=5 // pred_region
        %s404 = ssub.s32 %s23, 1
        // Predicated region
        $region65: #{tpu_custom_call.1} parent=63 // pred_check
          %p405 = pneg %p84
        $region66: #{tpu_custom_call.1} parent=63 // pred_check_branch
          %407 = sbr.rel (%p405) target = $region68
        $region67: #{tpu_custom_call.1} parent=63 // pred_region
          %408 = dma.done [#allocation5], 128
        $region68: #{tpu_custom_call.1} parent=63 // pred_fallthru
          _
        // Predicated region
        $region69: #{tpu_custom_call.1} parent=63 // pred_check
          %p409 = pneg %p105
        $region70: #{tpu_custom_call.1} parent=63 // pred_check_branch
          %411 = sbr.rel (%p409) target = $region72
        $region71: #{tpu_custom_call.1} parent=63 // pred_region
          %412 = dma.done [#allocation9], 512
        $region72: #{tpu_custom_call.1} parent=63 // pred_fallthru
          _
        // Predicated region
        $region73: #{tpu_custom_call.1} parent=63 // pred_check
          %p413 = pneg %p189
        $region74: #{tpu_custom_call.1} parent=63 // pred_check_branch
          %415 = sbr.rel (%p413) target = $region76
        $region75: #{tpu_custom_call.1} parent=63 // pred_region
          %416 = dma.done [#allocation9], 768
        $region76: #{tpu_custom_call.1} parent=63 // pred_fallthru
          _
        // Predicated region
        $region77: #{tpu_custom_call.1} parent=63 // pred_check
          %p417 = pneg %p273
        $region78: #{tpu_custom_call.1} parent=63 // pred_check_branch
          %419 = sbr.rel (%p417) target = $region80
        $region79: #{tpu_custom_call.1} parent=63 // pred_region
          %420 = dma.done [#allocation7], 32
        $region80: #{tpu_custom_call.1} parent=63 // pred_fallthru
          _
        %421 = sfence
        %p422 = scmp.lt.s32.totalorder %s32, 1
        %s423 = scalar_select %p422, %s32, 1
        %p424 = scmp.lt.s32.totalorder %s33, 1
        %s425 = scalar_select %p424, %s33, 1
        %s426 = smul.addr %s425, 4
        %s427 = smul.addr %s423, 8
        %s428 = sadd.s32 %s426, %s427
        %s429 = smul.addr %s428, 4
        %s430 = scalar_lea.vmem %s0, %s429
        %p431 = pneg %p63
        %p432 = pneg %p60
        %p433 = pneg %p84
        %p434 = pneg %p81
        %p435 = pneg %p105
        %p436 = pneg %p102
        %p437 = pneg %p126
        %p438 = pneg %p123
        %p439 = pneg %p147
        %p440 = pneg %p144
        %p441 = pneg %p168
        %p442 = pneg %p165
        %p443 = pneg %p189
        %p444 = pneg %p186
        %p445 = pneg %p210
        %p446 = pneg %p207
        %p447 = pneg %p231
        %p448 = pneg %p228
        %p449 = pneg %p252
        %p450 = pneg %p249
        %p451 = pneg %p273
        %p452 = pneg %p270
        %p453 = pneg %p301
        %p454 = pneg %p298
        %s455 = sand.u32 %s288, 1
        %s456 = scalar_lea.sflag [#allocation6], %s455
        %s457 = sand.u32 %s288, 1
        %s458 = smul.addr %s457, 32
        %s459 = scalar_lea.vmem [#allocation12], %s458
        %p460 = scmp.lt.s32.totalorder %s32, 1
        %s461 = scalar_select %p460, %s32, 1
        %p462 = scmp.lt.s32.totalorder %s33, 1
        %s463 = scalar_select %p462, %s33, 1
        %s464 = smul.addr %s463, 4
        %s465 = smul.addr %s461, 8
        %s466 = sadd.s32 %s464, %s465
        %s467 = smul.addr %s466, 4
        %s468 = scalar_lea.vmem %s0, %s467
        %s470 = smul.u32 %s33, 8
        %s471 = scvt.s32.f32 %s470
        %s472 = smul.u32 %s32, 128
        %s473 = sld [smem:[#allocation11 + %s472]]
        %s474 = sadd.s32 %s472, 1
        %s475 = sld [smem:[#allocation11 + %s474]]
        %v476 = vld [vmem:[#allocation4] sm:$0x77]
        %v477 = vld [vmem:[%s468] sm:$0xff]
        %v478 = vld [vmem:[%s468 + $0x8] sm:$0xff]
        %v481 = vunpack.c.l.b16 %v477
        %v482 = vunpack.c.h.b16 %v477
        %v483 = vunpack.c.l.b16 %v478
        %v484 = vunpack.c.h.b16 %v478
        %v485 = vpack.c.b16 %v483, %v481
        %v486 = vpack.c.b16 %v484, %v482
        %489 = vst [vmem:[#allocation2] sm:$0xff] %v485
        %vm490 = vcmask 703488
        %491 = vst.msk [vmem:[#allocation2 + $0x8] sm:$0xff] %vm490, %v486
        %492 = vrot.lane.b32.xlu0 %v485, 127
        %v493 = vpop.permute.xlu0 %492
        %494 = vrot.lane.b32.xlu0 %v486, 127
        %v495 = vpop.permute.xlu0 %494
        %vm496 = vcmask 1039360
        %v497 = vsel %vm496, %v493, %v495
        %500 = vst [vmem:[#allocation2 + $0x10] sm:$0xff] %v497
        %501 = vst.msk [vmem:[#allocation2 + $0x18] sm:$0xff] %vm490, %v495
        %502 = vrot.lane.b32.xlu0 %v485, 126
        %v503 = vpop.permute.xlu0 %502
        %504 = vrot.lane.b32.xlu0 %v486, 126
        %v505 = vpop.permute.xlu0 %504
        %vm506 = vcmask 1031168
        %v507 = vsel %vm506, %v503, %v505
        %510 = vst [vmem:[#allocation2 + $0x20] sm:$0xff] %v507
        %511 = vst.msk [vmem:[#allocation2 + $0x28] sm:$0xff] %vm490, %v505
        %512 = vrot.lane.b32.xlu0 %v485, 110
        %v513 = vpop.permute.xlu0 %512
        %514 = vrot.lane.b32.xlu0 %v486, 110
        %v515 = vpop.permute.xlu0 %514
        %vm516 = vcmask 900096
        %v517 = vsel %vm516, %v513, %v515
        %520 = vst [vmem:[#allocation2 + $0x30] sm:$0xff] %v517
        %521 = vst.msk [vmem:[#allocation2 + $0x38] sm:$0xff] %vm490, %v515
        %522 = vrot.lane.b32.xlu0 %v485, 109
        %v523 = vpop.permute.xlu0 %522
        %524 = vrot.lane.b32.xlu0 %v486, 109
        %v525 = vpop.permute.xlu0 %524
        %vm526 = vcmask 891904
        %v527 = vsel %vm526, %v523, %v525
        %530 = vst [vmem:[#allocation2 + $0x40] sm:$0xff] %v527
        %531 = vst.msk [vmem:[#allocation2 + $0x48] sm:$0xff] %vm490, %v525
        %532 = vrot.lane.b32.xlu0 %v485, 108
        %v533 = vpop.permute.xlu0 %532
        %534 = vrot.lane.b32.xlu0 %v486, 108
        %v535 = vpop.permute.xlu0 %534
        %vm536 = vcmask 883712
        %v537 = vsel %vm536, %v533, %v535
        %540 = vst [vmem:[#allocation2 + $0x50] sm:$0xff] %v537
        %541 = vst.msk [vmem:[#allocation2 + $0x58] sm:$0xff] %vm490, %v535
        %542 = vrot.lane.b32.xlu0 %v485, 92
        %v543 = vpop.permute.xlu0 %542
        %544 = vrot.lane.b32.xlu0 %v486, 92
        %v545 = vpop.permute.xlu0 %544
        %vm546 = vcmask 752640
        %v547 = vsel %vm546, %v543, %v545
        %550 = vst [vmem:[#allocation2 + $0x60] sm:$0xff] %v547
        %551 = vst.msk [vmem:[#allocation2 + $0x68] sm:$0xff] %vm490, %v545
        %552 = vrot.lane.b32.xlu0 %v485, 91
        %v553 = vpop.permute.xlu0 %552
        %554 = vrot.lane.b32.xlu0 %v486, 91
        %v555 = vpop.permute.xlu0 %554
        %vm556 = vcmask 744448
        %v557 = vsel %vm556, %v553, %v555
        %560 = vst [vmem:[#allocation2 + $0x70] sm:$0xff] %v557
        %561 = vst.msk [vmem:[#allocation2 + $0x78] sm:$0xff] %vm490, %v555
        %562 = vrot.lane.b32.xlu0 %v485, 90
        %v563 = vpop.permute.xlu0 %562
        %564 = vrot.lane.b32.xlu0 %v486, 90
        %v565 = vpop.permute.xlu0 %564
        %vm566 = vcmask 736256
        %v567 = vsel %vm566, %v563, %v565
        %570 = vst [vmem:[#allocation2 + $0x80] sm:$0xff] %v567
        %571 = vst.msk [vmem:[#allocation2 + $0x88] sm:$0xff] %vm490, %v565
        %v572 = vld [vmem:[#allocation8] sm:$0xff]
        %v573 = vld [vmem:[#allocation8 + $0x8] sm:$0xff]
        %v574 = vld [vmem:[#allocation8 + $0x10] sm:$0xff]
        %v575 = vld [vmem:[#allocation8 + $0x18] sm:$0xff]
        %v576 = vld [vmem:[#allocation2] sm:$0xff]
        %v577 = vld [vmem:[#allocation2 + $0x8] sm:$0xff]
        %v578 = vld [vmem:[#allocation2 + $0x10] sm:$0xff]
        %v579 = vld [vmem:[#allocation2 + $0x18] sm:$0xff]
        %v580 = vld [vmem:[#allocation2 + $0x20] sm:$0xff]
        %v581 = vld [vmem:[#allocation2 + $0x28] sm:$0xff]
        %v582 = vld [vmem:[#allocation2 + $0x30] sm:$0xff]
        %v583 = vld [vmem:[#allocation2 + $0x38] sm:$0xff]
        %v584 = vld [vmem:[#allocation2 + $0x40] sm:$0xff]
        %v585 = vld [vmem:[#allocation2 + $0x48] sm:$0xff]
        %v586 = vld [vmem:[#allocation2 + $0x50] sm:$0xff]
        %v587 = vld [vmem:[#allocation2 + $0x58] sm:$0xff]
        %v588 = vld [vmem:[#allocation2 + $0x60] sm:$0xff]
        %v589 = vld [vmem:[#allocation2 + $0x68] sm:$0xff]
        %v590 = vld [vmem:[#allocation2 + $0x70] sm:$0xff]
        %v591 = vld [vmem:[#allocation2 + $0x78] sm:$0xff]
        %v592 = vld [vmem:[#allocation2 + $0x80] sm:$0xff]
        %v593 = vld [vmem:[#allocation2 + $0x88] sm:$0xff]
        %v594 = vld [vmem:[%s3] sm:$0xff]
        %v595 = vld [vmem:[%s3 + $0x8] sm:$0xff]
        %v596 = vld [vmem:[%s3 + $0x10] sm:$0xff]
        %v597 = vld [vmem:[%s3 + $0x18] sm:$0xff]
        %599 = vset.pattern.permute.xlu0 0
        %600 = vperm.xlu0 %599, %v594
        %v601 = vpop.permute.xlu0 %600
        %604 = vset.pattern.permute.xlu0 0
        %605 = vperm.xlu0 %604, %v595
        %v606 = vpop.permute.xlu0 %605
        %609 = vset.pattern.permute.xlu0 0
        %610 = vperm.xlu0 %609, %v596
        %v611 = vpop.permute.xlu0 %610
        %614 = vset.pattern.permute.xlu0 0
        %615 = vperm.xlu0 %614, %v597
        %v616 = vpop.permute.xlu0 %615
        %v622 = vunpack.c.l.b16 %v572
        %v623 = vunpack.c.h.b16 %v572
        %v624 = vunpack.c.l.b16 %v573
        %v625 = vunpack.c.h.b16 %v573
        %v626 = vunpack.c.l.b16 %v574
        %v627 = vunpack.c.h.b16 %v574
        %v628 = vunpack.c.l.b16 %v575
        %v629 = vunpack.c.h.b16 %v575
        %v630 = vpack.c.b16 %v624, %v622
        %v631 = vpack.c.b16 %v625, %v623
        %v632 = vpack.c.b16 %v628, %v626
        %v633 = vpack.c.b16 %v629, %v627
        %vm636 = vcmask 130048
        %v638 = vsel %vm636, %v631, 0
        %v641 = vsel %vm636, %v633, 0
        %643 = vmatprep.subr.bf16.mxu0 %v577
        %644 = vmatpush1.bf16.msra.mxu0 %v576
        %645 = vmatprep.subr.bf16.mxu0 %v579
        %646 = vmatpush1.bf16.msra.mxu0 %v578
        %647 = vmatprep.subr.bf16.mxu0 %v581
        %648 = vmatpush1.bf16.msra.mxu0 %v580
        %649 = vmatprep.subr.bf16.mxu0 %v583
        %650 = vmatpush1.bf16.msra.mxu0 %v582
        %651 = vmatprep.subr.bf16.mxu0 %v585
        %652 = vmatpush1.bf16.msra.mxu0 %v584
        %653 = vmatprep.subr.bf16.mxu0 %v587
        %654 = vmatpush1.bf16.msra.mxu0 %v586
        %655 = vmatprep.subr.bf16.mxu0 %v589
        %656 = vmatpush1.bf16.msra.mxu0 %v588
        %657 = vmatprep.subr.bf16.mxu0 %v591
        %658 = vmatpush1.bf16.msra.mxu0 %v590
        %659 = vmatprep.subr.bf16.mxu0 %v593
        %660 = vmatpush1.bf16.msra.mxu0 %v592
        %661 = vmatprep.subr.bf16.mxu0 0
        %662 = vmatpush1.bf16.msra.mxu0 0
        %663 = vmatprep.subr.bf16.mxu0 0
        %664 = vmatpush1.bf16.msra.mxu0 0
        %665 = vmatprep.subr.bf16.mxu0 0
        %666 = vmatpush1.bf16.msra.mxu0 0
        %667 = vmatprep.subr.bf16.mxu0 0
        %668 = vmatpush1.bf16.msra.mxu0 0
        %669 = vmatprep.subr.bf16.mxu0 0
        %670 = vmatpush1.bf16.msra.mxu0 0
        %671 = vmatprep.subr.bf16.mxu0 0
        %672 = vmatpush1.bf16.msra.mxu0 0
        %673 = vmatprep.subr.bf16.mxu0 0
        %674 = vmatpush1.bf16.msra.mxu0 0
        %675 = vmatprep.mubr.bf16.mxu0 %v638
        %676 = vmatmul.mubr.bf16.gmra.mrb[0].mxu0 %v630
        %v677 = vpop.f32.mrb[0].mxu0
        %v678 = vadd.f32 %v601, %v677
        %v679 = vpop.f32.mrb[0].mxu0
        %v680 = vadd.f32 %v601, %v679
        %v681 = vpop.f32.mrb[0].mxu0
        %v682 = vadd.f32 %v606, %v681
        %v683 = vpop.f32.mrb[0].mxu0
        %v684 = vadd.f32 %v606, %v683
        %685 = vmatprep.mubr.bf16.mxu0 %v641
        %686 = vmatmul.mubr.bf16.gmra.mrb[0].mxu0 %v632
        %v687 = vpop.f32.mrb[0].mxu0
        %v688 = vadd.f32 %v611, %v687
        %v689 = vpop.f32.mrb[0].mxu0
        %v690 = vadd.f32 %v611, %v689
        %v691 = vpop.f32.mrb[0].mxu0
        %v692 = vadd.f32 %v616, %v691
        %v693 = vpop.f32.mrb[0].mxu0
        %v694 = vadd.f32 %v616, %v693
        %695 = vdwg.mxu0
        %v696 = vmax.f32 %v678, 0.0
        %v697 = vmax.f32 %v680, 0.0
        %v698 = vmax.f32 %v682, 0.0
        %v699 = vmax.f32 %v684, 0.0
        %v700 = vmax.f32 %v688, 0.0
        %v701 = vmax.f32 %v690, 0.0
        %v702 = vmax.f32 %v692, 0.0
        %v703 = vmax.f32 %v694, 0.0
        %s704 = ssub.f32 %s471, 2.0
        %v705 = vstv %s704
        %v706 = vadd.f32 %v705, %v476
        %vm707 = vcmp.ge.f32.partialorder %v706, 0.0
        %vm708 = vcmp.le.f32.partialorder %v706, 15.0
        %vm709 = vmand %vm707, %vm708
        %v710 = vsel %vm709, 1.0, 0.0
        %v712 = vrot.slane %v710, 5
        %v713 = vrot.slane %v712, 4
        %v715 = vmul.f32 %v476, %v713
        %vm716 = vcmask 7168
        %717 = vst.msk [vmem:[#allocation3] sm:$0xff] %vm716, 0
        %718 = vst.msk [vmem:[#allocation3 + $0x10] sm:$0xff] %vm716, 0
        %v720 = vlaneseq
        %v721 = vshrl.u32 %v720, 7
        %v722 = vsub.s32 0, %v721
        %v723 = vrot.slane %v715, %v722
        %v724 = vlaneseq
        %v725 = vshrl.u32 %v724, 7
        %v726 = vsub.s32 4, %v725
        %v727 = vrot.slane %v715, %v726
        %v730 = vlaneseq
        %v731 = vshrl.u32 %v730, 7
        %v732 = vsub.s32 0, %v731
        %v733 = vrot.slane %v723, %v732
        %v734 = vlaneseq
        %v735 = vshrl.u32 %v734, 7
        %v736 = vsub.s32 0, %v735
        %v737 = vrot.slane %v727, %v736
        %v738 = vmul.f32 %v696, %v733
        %v739 = vmul.f32 %v697, %v737
        %v740 = vmul.f32 %v698, %v733
        %v741 = vmul.f32 %v699, %v737
        %v742 = vmul.f32 %v700, %v733
        %v743 = vmul.f32 %v701, %v737
        %v744 = vmul.f32 %v702, %v733
        %v745 = vmul.f32 %v703, %v737
        %v746 = vpack.c.bf16 %v740, %v738
        %v747 = vpack.c.bf16 %v741, %v739
        %v748 = vpack.c.bf16 %v744, %v742
        %v749 = vpack.c.bf16 %v745, %v743
        %754 = vrot.lane.b32.xlu0 %v746, 1
        %v755 = vpop.permute.xlu0 %754
        %756 = vrot.lane.b32.xlu0 %v747, 1
        %v757 = vpop.permute.xlu0 %756
        %758 = vrot.lane.b32.xlu0 %v748, 1
        %v759 = vpop.permute.xlu0 %758
        %760 = vrot.lane.b32.xlu0 %v749, 1
        %v761 = vpop.permute.xlu0 %760
        %vm762 = vcmask 7168
        %v763 = vsel %vm762, %v755, %v757
        %v764 = vsel %vm762, %v759, %v761
        %vm769 = vcmask 1047560
        %770 = vst.msk [vmem:[#allocation3] sm:$0xff] %vm769, %v755
        %vm771 = vcmask 711680
        %772 = vst.msk [vmem:[#allocation3 + $0x8] sm:$0xff] %vm771, %v763
        %773 = vst.msk [vmem:[#allocation3 + $0x10] sm:$0xff] %vm769, %v759
        %774 = vst.msk [vmem:[#allocation3 + $0x18] sm:$0xff] %vm771, %v764
        %vm775 = vcmask 720568
        %776 = vst.msk [vmem:[#allocation3 + $0x8] sm:$0xff] %vm775, 0
        %777 = vst.msk [vmem:[#allocation3 + $0x18] sm:$0xff] %vm775, 0
        %v778 = vld [vmem:[#allocation3] sm:$0xff]
        %v779 = vld [vmem:[#allocation3 + $0x8] sm:$0xff]
        %v780 = vld [vmem:[#allocation3 + $0x10] sm:$0xff]
        %v781 = vld [vmem:[#allocation3 + $0x18] sm:$0xff]
        %782 = vst [vmem:[#allocation2] sm:$0xff] %v778
        %vm783 = vcmask 408576
        %784 = vst.msk [vmem:[#allocation2 + $0x8] sm:$0xff] %vm783, %v779
        %785 = vst [vmem:[#allocation2 + $0x10] sm:$0xff] %v780
        %786 = vst.msk [vmem:[#allocation2 + $0x18] sm:$0xff] %vm783, %v781
        %791 = vrot.lane.b32.xlu0 %v778, 127
        %v792 = vpop.permute.xlu0 %791
        %793 = vrot.lane.b32.xlu0 %v779, 127
        %v794 = vpop.permute.xlu0 %793
        %795 = vrot.lane.b32.xlu0 %v780, 127
        %v796 = vpop.permute.xlu0 %795
        %797 = vrot.lane.b32.xlu0 %v781, 127
        %v798 = vpop.permute.xlu0 %797
        %v799 = vsel %vm496, %v792, %v794
        %v800 = vsel %vm496, %v796, %v798
        %805 = vst [vmem:[#allocation2 + $0x20] sm:$0xff] %v799
        %806 = vst.msk [vmem:[#allocation2 + $0x28] sm:$0xff] %vm783, %v794
        %807 = vst [vmem:[#allocation2 + $0x30] sm:$0xff] %v800
        %808 = vst.msk [vmem:[#allocation2 + $0x38] sm:$0xff] %vm783, %v798
        %809 = vrot.lane.b32.xlu0 %v778, 126
        %v810 = vpop.permute.xlu0 %809
        %811 = vrot.lane.b32.xlu0 %v779, 126
        %v812 = vpop.permute.xlu0 %811
        %813 = vrot.lane.b32.xlu0 %v780, 126
        %v814 = vpop.permute.xlu0 %813
        %815 = vrot.lane.b32.xlu0 %v781, 126
        %v816 = vpop.permute.xlu0 %815
        %v817 = vsel %vm506, %v810, %v812
        %v818 = vsel %vm506, %v814, %v816
        %823 = vst [vmem:[#allocation2 + $0x40] sm:$0xff] %v817
        %824 = vst.msk [vmem:[#allocation2 + $0x48] sm:$0xff] %vm783, %v812
        %825 = vst [vmem:[#allocation2 + $0x50] sm:$0xff] %v818
        %826 = vst.msk [vmem:[#allocation2 + $0x58] sm:$0xff] %vm783, %v816
        %827 = vrot.lane.b32.xlu0 %v778, 110
        %v828 = vpop.permute.xlu0 %827
        %829 = vrot.lane.b32.xlu0 %v779, 110
        %v830 = vpop.permute.xlu0 %829
        %831 = vrot.lane.b32.xlu0 %v780, 110
        %v832 = vpop.permute.xlu0 %831
        %833 = vrot.lane.b32.xlu0 %v781, 110
        %v834 = vpop.permute.xlu0 %833
        %v835 = vsel %vm516, %v828, %v830
        %v836 = vsel %vm516, %v832, %v834
        %841 = vst [vmem:[#allocation2 + $0x60] sm:$0xff] %v835
        %842 = vst.msk [vmem:[#allocation2 + $0x68] sm:$0xff] %vm783, %v830
        %843 = vst [vmem:[#allocation2 + $0x70] sm:$0xff] %v836
        %844 = vst.msk [vmem:[#allocation2 + $0x78] sm:$0xff] %vm783, %v834
        %845 = vrot.lane.b32.xlu0 %v778, 109
        %v846 = vpop.permute.xlu0 %845
        %847 = vrot.lane.b32.xlu0 %v779, 109
        %v848 = vpop.permute.xlu0 %847
        %849 = vrot.lane.b32.xlu0 %v780, 109
        %v850 = vpop.permute.xlu0 %849
        %851 = vrot.lane.b32.xlu0 %v781, 109
        %v852 = vpop.permute.xlu0 %851
        %v853 = vsel %vm526, %v846, %v848
        %v854 = vsel %vm526, %v850, %v852
        %859 = vst [vmem:[#allocation2 + $0x80] sm:$0xff] %v853
        %860 = vst.msk [vmem:[#allocation2 + $0x88] sm:$0xff] %vm783, %v848
        %861 = vst [vmem:[#allocation2 + $0x90] sm:$0xff] %v854
        %862 = vst.msk [vmem:[#allocation2 + $0x98] sm:$0xff] %vm783, %v852
        %863 = vrot.lane.b32.xlu0 %v778, 108
        %v864 = vpop.permute.xlu0 %863
        %865 = vrot.lane.b32.xlu0 %v779, 108
        %v866 = vpop.permute.xlu0 %865
        %867 = vrot.lane.b32.xlu0 %v780, 108
        %v868 = vpop.permute.xlu0 %867
        %869 = vrot.lane.b32.xlu0 %v781, 108
        %v870 = vpop.permute.xlu0 %869
        %v871 = vsel %vm536, %v864, %v866
        %v872 = vsel %vm536, %v868, %v870
        %877 = vst [vmem:[#allocation2 + $0xa0] sm:$0xff] %v871
        %878 = vst.msk [vmem:[#allocation2 + $0xa8] sm:$0xff] %vm783, %v866
        %879 = vst [vmem:[#allocation2 + $0xb0] sm:$0xff] %v872
        %880 = vst.msk [vmem:[#allocation2 + $0xb8] sm:$0xff] %vm783, %v870
        %881 = vrot.lane.b32.xlu0 %v778, 92
        %v882 = vpop.permute.xlu0 %881
        %883 = vrot.lane.b32.xlu0 %v779, 92
        %v884 = vpop.permute.xlu0 %883
        %885 = vrot.lane.b32.xlu0 %v780, 92
        %v886 = vpop.permute.xlu0 %885
        %887 = vrot.lane.b32.xlu0 %v781, 92
        %v888 = vpop.permute.xlu0 %887
        %v889 = vsel %vm546, %v882, %v884
        %v890 = vsel %vm546, %v886, %v888
        %895 = vst [vmem:[#allocation2 + $0xc0] sm:$0xff] %v889
        %896 = vst.msk [vmem:[#allocation2 + $0xc8] sm:$0xff] %vm783, %v884
        %897 = vst [vmem:[#allocation2 + $0xd0] sm:$0xff] %v890
        %898 = vst.msk [vmem:[#allocation2 + $0xd8] sm:$0xff] %vm783, %v888
        %899 = vrot.lane.b32.xlu0 %v778, 91
        %v900 = vpop.permute.xlu0 %899
        %901 = vrot.lane.b32.xlu0 %v779, 91
        %v902 = vpop.permute.xlu0 %901
        %903 = vrot.lane.b32.xlu0 %v780, 91
        %v904 = vpop.permute.xlu0 %903
        %905 = vrot.lane.b32.xlu0 %v781, 91
        %v906 = vpop.permute.xlu0 %905
        %v907 = vsel %vm556, %v900, %v902
        %v908 = vsel %vm556, %v904, %v906
        %913 = vst [vmem:[#allocation2 + $0xe0] sm:$0xff] %v907
        %914 = vst.msk [vmem:[#allocation2 + $0xe8] sm:$0xff] %vm783, %v902
        %915 = vst [vmem:[#allocation2 + $0xf0] sm:$0xff] %v908
        %916 = vst.msk [vmem:[#allocation2 + $0xf8] sm:$0xff] %vm783, %v906
        %917 = vrot.lane.b32.xlu0 %v778, 90
        %v918 = vpop.permute.xlu0 %917
        %919 = vrot.lane.b32.xlu0 %v779, 90
        %v920 = vpop.permute.xlu0 %919
        %921 = vrot.lane.b32.xlu0 %v780, 90
        %v922 = vpop.permute.xlu0 %921
        %923 = vrot.lane.b32.xlu0 %v781, 90
        %v924 = vpop.permute.xlu0 %923
        %v925 = vsel %vm566, %v918, %v920
        %v926 = vsel %vm566, %v922, %v924
        %931 = vst [vmem:[#allocation2 + $0x100] sm:$0xff] %v925
        %932 = vst.msk [vmem:[#allocation2 + $0x108] sm:$0xff] %vm783, %v920
        %933 = vst [vmem:[#allocation2 + $0x110] sm:$0xff] %v926
        %934 = vst.msk [vmem:[#allocation2 + $0x118] sm:$0xff] %vm783, %v924
        %v935 = vld [vmem:[%s4] sm:$0xff]
        %v936 = vld [vmem:[%s4 + $0x8] sm:$0xf]
        %v937 = vld [vmem:[%s4 + $0xc] sm:$0xff]
        %v938 = vld [vmem:[%s4 + $0x14] sm:$0xf]
        %v939 = vld [vmem:[%s4 + $0x18] sm:$0xff]
        %v940 = vld [vmem:[%s4 + $0x20] sm:$0xf]
        %v941 = vld [vmem:[%s4 + $0x24] sm:$0xff]
        %v942 = vld [vmem:[%s4 + $0x2c] sm:$0xf]
        %v943 = vld [vmem:[#allocation2] sm:$0xff]
        %v944 = vld [vmem:[#allocation2 + $0x8] sm:$0xff]
        %v945 = vld [vmem:[#allocation2 + $0x10] sm:$0xff]
        %v946 = vld [vmem:[#allocation2 + $0x18] sm:$0xff]
        %v947 = vld [vmem:[#allocation2 + $0x20] sm:$0xff]
        %v948 = vld [vmem:[#allocation2 + $0x28] sm:$0xff]
        %v949 = vld [vmem:[#allocation2 + $0x30] sm:$0xff]
        %v950 = vld [vmem:[#allocation2 + $0x38] sm:$0xff]
        %v951 = vld [vmem:[#allocation2 + $0x40] sm:$0xff]
        %v952 = vld [vmem:[#allocation2 + $0x48] sm:$0xff]
        %v953 = vld [vmem:[#allocation2 + $0x50] sm:$0xff]
        %v954 = vld [vmem:[#allocation2 + $0x58] sm:$0xff]
        %v955 = vld [vmem:[#allocation2 + $0x60] sm:$0xff]
        %v956 = vld [vmem:[#allocation2 + $0x68] sm:$0xff]
        %v957 = vld [vmem:[#allocation2 + $0x70] sm:$0xff]
        %v958 = vld [vmem:[#allocation2 + $0x78] sm:$0xff]
        %v959 = vld [vmem:[#allocation2 + $0x80] sm:$0xff]
        %v960 = vld [vmem:[#allocation2 + $0x88] sm:$0xff]
        %v961 = vld [vmem:[#allocation2 + $0x90] sm:$0xff]
        %v962 = vld [vmem:[#allocation2 + $0x98] sm:$0xff]
        %v963 = vld [vmem:[#allocation2 + $0xa0] sm:$0xff]
        %v964 = vld [vmem:[#allocation2 + $0xa8] sm:$0xff]
        %v965 = vld [vmem:[#allocation2 + $0xb0] sm:$0xff]
        %v966 = vld [vmem:[#allocation2 + $0xb8] sm:$0xff]
        %v967 = vld [vmem:[#allocation2 + $0xc0] sm:$0xff]
        %v968 = vld [vmem:[#allocation2 + $0xc8] sm:$0xff]
        %v969 = vld [vmem:[#allocation2 + $0xd0] sm:$0xff]
        %v970 = vld [vmem:[#allocation2 + $0xd8] sm:$0xff]
        %v971 = vld [vmem:[#allocation2 + $0xe0] sm:$0xff]
        %v972 = vld [vmem:[#allocation2 + $0xe8] sm:$0xff]
        %v973 = vld [vmem:[#allocation2 + $0xf0] sm:$0xff]
        %v974 = vld [vmem:[#allocation2 + $0xf8] sm:$0xff]
        %v975 = vld [vmem:[#allocation2 + $0x100] sm:$0xff]
        %v976 = vld [vmem:[#allocation2 + $0x108] sm:$0xff]
        %v977 = vld [vmem:[#allocation2 + $0x110] sm:$0xff]
        %v978 = vld [vmem:[#allocation2 + $0x118] sm:$0xff]
        %v979 = vld [vmem:[%s5] sm:$0xff]
        %v980 = vld [vmem:[%s5 + $0x8] sm:$0xff]
        %v981 = vld [vmem:[%s5 + $0x10] sm:$0xff]
        %v982 = vld [vmem:[%s5 + $0x18] sm:$0xff]
        %984 = vset.pattern.permute.xlu0 0
        %985 = vperm.xlu0 %984, %v979
        %v986 = vpop.permute.xlu0 %985
        %989 = vset.pattern.permute.xlu0 0
        %990 = vperm.xlu0 %989, %v980
        %v991 = vpop.permute.xlu0 %990
        %994 = vset.pattern.permute.xlu0 0
        %995 = vperm.xlu0 %994, %v981
        %v996 = vpop.permute.xlu0 %995
        %999 = vset.pattern.permute.xlu0 0
        %1000 = vperm.xlu0 %999, %v982
        %v1001 = vpop.permute.xlu0 %1000
        %v1011 = vunpack.c.l.b16 %v935
        %v1012 = vunpack.c.h.b16 %v935
        %v1013 = vunpack.c.l.b16 %v936
        %v1014 = vunpack.c.l.b16 %v937
        %v1015 = vunpack.c.h.b16 %v937
        %v1016 = vunpack.c.l.b16 %v938
        %v1017 = vunpack.c.l.b16 %v939
        %v1018 = vunpack.c.h.b16 %v939
        %v1019 = vunpack.c.l.b16 %v940
        %v1020 = vunpack.c.l.b16 %v941
        %v1021 = vunpack.c.h.b16 %v941
        %v1022 = vunpack.c.l.b16 %v942
        %v1023 = vpack.c.b16 %v1014, %v1011
        %v1024 = vpack.c.b16 %v1015, %v1012
        %v1025 = vpack.c.b16 %v1016, %v1013
        %v1026 = vpack.c.b16 %v1020, %v1017
        %v1027 = vpack.c.b16 %v1021, %v1018
        %v1028 = vpack.c.b16 %v1022, %v1019
        %vm1033 = vcmask 261120
        %v1035 = vsel %vm1033, %v1025, 0
        %v1038 = vsel %vm1033, %v1028, 0
        %1040 = vmatprep.subr.bf16.mxu0 %v944
        %1041 = vmatpush1.bf16.msra.mxu0 %v943
        %1042 = vmatprep.subr.bf16.mxu0 %v946
        %1043 = vmatpush1.bf16.msra.mxu0 %v945
        %1044 = vmatprep.subr.bf16.mxu0 %v948
        %1045 = vmatpush1.bf16.msra.mxu0 %v947
        %1046 = vmatprep.subr.bf16.mxu0 %v950
        %1047 = vmatpush1.bf16.msra.mxu0 %v949
        %1048 = vmatprep.subr.bf16.mxu0 %v952
        %1049 = vmatpush1.bf16.msra.mxu0 %v951
        %1050 = vmatprep.subr.bf16.mxu0 %v954
        %1051 = vmatpush1.bf16.msra.mxu0 %v953
        %1052 = vmatprep.subr.bf16.mxu0 %v956
        %1053 = vmatpush1.bf16.msra.mxu0 %v955
        %1054 = vmatprep.subr.bf16.mxu0 %v958
        %1055 = vmatpush1.bf16.msra.mxu0 %v957
        %1056 = vmatprep.subr.bf16.mxu0 %v960
        %1057 = vmatpush1.bf16.msra.mxu0 %v959
        %1058 = vmatprep.subr.bf16.mxu0 %v962
        %1059 = vmatpush1.bf16.msra.mxu0 %v961
        %1060 = vmatprep.subr.bf16.mxu0 %v964
        %1061 = vmatpush1.bf16.msra.mxu0 %v963
        %1062 = vmatprep.subr.bf16.mxu0 %v966
        %1063 = vmatpush1.bf16.msra.mxu0 %v965
        %1064 = vmatprep.subr.bf16.mxu0 %v968
        %1065 = vmatpush1.bf16.msra.mxu0 %v967
        %1066 = vmatprep.subr.bf16.mxu0 %v970
        %1067 = vmatpush1.bf16.msra.mxu0 %v969
        %1068 = vmatprep.subr.bf16.mxu0 %v972
        %1069 = vmatpush1.bf16.msra.mxu0 %v971
        %1070 = vmatprep.subr.bf16.mxu0 %v974
        %1071 = vmatpush1.bf16.msra.mxu0 %v973
        %1072 = vmatprep.mubr.bf16.mxu0 %v1024
        %1073 = vmatmul.mubr.bf16.gmra.mrb[0].mxu0 %v1023
        %v1074 = vpop.f32.mrb[0].mxu0
        %v1075 = vadd.f32 %v986, %v1074
        %v1076 = vpop.f32.mrb[0].mxu0
        %v1077 = vadd.f32 %v986, %v1076
        %v1078 = vpop.f32.mrb[0].mxu0
        %v1079 = vadd.f32 %v991, %v1078
        %v1080 = vpop.f32.mrb[0].mxu0
        %v1081 = vadd.f32 %v991, %v1080
        %1082 = vmatprep.mubr.bf16.mxu0 %v1027
        %1083 = vmatmul.mubr.bf16.gmra.mrb[0].mxu0 %v1026
        %v1084 = vpop.f32.mrb[0].mxu0
        %v1085 = vadd.f32 %v996, %v1084
        %v1086 = vpop.f32.mrb[0].mxu0
        %v1087 = vadd.f32 %v996, %v1086
        %v1088 = vpop.f32.mrb[0].mxu0
        %v1089 = vadd.f32 %v1001, %v1088
        %v1090 = vpop.f32.mrb[0].mxu0
        %v1091 = vadd.f32 %v1001, %v1090
        %1092 = vdwg.mxu0
        %1093 = vmatprep.subr.bf16.mxu0 %v976
        %1094 = vmatpush1.bf16.msra.mxu0 %v975
        %1095 = vmatprep.subr.bf16.mxu0 %v978
        %1096 = vmatpush1.bf16.msra.mxu0 %v977
        %1097 = vmatprep.subr.bf16.mxu0 0
        %1098 = vmatpush1.bf16.msra.mxu0 0
        %1099 = vmatprep.subr.bf16.mxu0 0
        %1100 = vmatpush1.bf16.msra.mxu0 0
        %1101 = vmatprep.subr.bf16.mxu0 0
        %1102 = vmatpush1.bf16.msra.mxu0 0
        %1103 = vmatprep.subr.bf16.mxu0 0
        %1104 = vmatpush1.bf16.msra.mxu0 0
        %1105 = vmatprep.subr.bf16.mxu0 0
        %1106 = vmatpush1.bf16.msra.mxu0 0
        %1107 = vmatprep.subr.bf16.mxu0 0
        %1108 = vmatpush1.bf16.msra.mxu0 0
        %1109 = vmatprep.subr.bf16.mxu0 0
        %1110 = vmatpush1.bf16.msra.mxu0 0
        %1111 = vmatprep.subr.bf16.mxu0 0
        %1112 = vmatpush1.bf16.msra.mxu0 0
        %1113 = vmatprep.subr.bf16.mxu0 0
        %1114 = vmatpush1.bf16.msra.mxu0 0
        %1115 = vmatprep.subr.bf16.mxu0 0
        %1116 = vmatpush1.bf16.msra.mxu0 0
        %1117 = vmatprep.subr.bf16.mxu0 0
        %1118 = vmatpush1.bf16.msra.mxu0 0
        %1119 = vmatprep.subr.bf16.mxu0 0
        %1120 = vmatpush1.bf16.msra.mxu0 0
        %1121 = vmatprep.subr.bf16.mxu0 0
        %1122 = vmatpush1.bf16.msra.mxu0 0
        %1123 = vmatprep.subr.bf16.mxu0 0
        %1124 = vmatpush1.bf16.msra.mxu0 0
        %1125 = vmatprep.mubr.bf16.mxu0 0
        %1126 = vmatmul.mubr.bf16.gmra.mrb[0].mxu0 %v1035
        %v1127 = vpop.f32.mrb[0].mxu0
        %v1128 = vadd.f32 %v1075, %v1127
        %v1129 = vpop.f32.mrb[0].mxu0
        %v1130 = vadd.f32 %v1077, %v1129
        %v1131 = vpop.f32.mrb[0].mxu0
        %v1132 = vadd.f32 %v1079, %v1131
        %v1133 = vpop.f32.mrb[0].mxu0
        %v1134 = vadd.f32 %v1081, %v1133
        %1135 = vmatprep.mubr.bf16.mxu0 0
        %1136 = vmatmul.mubr.bf16.gmra.mrb[0].mxu0 %v1038
        %v1137 = vpop.f32.mrb[0].mxu0
        %v1138 = vadd.f32 %v1085, %v1137
        %v1139 = vpop.f32.mrb[0].mxu0
        %v1140 = vadd.f32 %v1087, %v1139
        %v1141 = vpop.f32.mrb[0].mxu0
        %v1142 = vadd.f32 %v1089, %v1141
        %v1143 = vpop.f32.mrb[0].mxu0
        %v1144 = vadd.f32 %v1091, %v1143
        %1145 = vdwg.mxu0
        %v1146 = vmax.f32 %v1128, 0.0
        %v1147 = vmax.f32 %v1130, 0.0
        %v1148 = vmax.f32 %v1132, 0.0
        %v1149 = vmax.f32 %v1134, 0.0
        %v1150 = vmax.f32 %v1138, 0.0
        %v1151 = vmax.f32 %v1140, 0.0
        %v1152 = vmax.f32 %v1142, 0.0
        %v1153 = vmax.f32 %v1144, 0.0
        %s1154 = ssub.f32 %s471, 1.0
        %v1155 = vstv %s1154
        %v1156 = vadd.f32 %v1155, %v476
        %vm1157 = vcmp.ge.f32.partialorder %v1156, 0.0
        %vm1158 = vcmp.le.f32.partialorder %v1156, 15.0
        %vm1159 = vmand %vm1157, %vm1158
        %v1160 = vsel %vm1159, 1.0, 0.0
        %v1162 = vrot.slane %v1160, 5
        %v1163 = vrot.slane %v1162, 4
        %v1165 = vmul.f32 %v476, %v1163
        %1166 = vst.msk [vmem:[#allocation3] sm:$0xff] %vm716, 0
        %1167 = vst.msk [vmem:[#allocation3 + $0x10] sm:$0xff] %vm716, 0
        %v1169 = vlaneseq
        %v1170 = vshrl.u32 %v1169, 7
        %v1171 = vsub.s32 0, %v1170
        %v1172 = vrot.slane %v1165, %v1171
        %v1173 = vlaneseq
        %v1174 = vshrl.u32 %v1173, 7
        %v1175 = vsub.s32 4, %v1174
        %v1176 = vrot.slane %v1165, %v1175
        %v1179 = vlaneseq
        %v1180 = vshrl.u32 %v1179, 7
        %v1181 = vsub.s32 0, %v1180
        %v1182 = vrot.slane %v1172, %v1181
        %v1183 = vlaneseq
        %v1184 = vshrl.u32 %v1183, 7
        %v1185 = vsub.s32 0, %v1184
        %v1186 = vrot.slane %v1176, %v1185
        %v1187 = vmul.f32 %v1146, %v1182
        %v1188 = vmul.f32 %v1147, %v1186
        %v1189 = vmul.f32 %v1148, %v1182
        %v1190 = vmul.f32 %v1149, %v1186
        %v1191 = vmul.f32 %v1150, %v1182
        %v1192 = vmul.f32 %v1151, %v1186
        %v1193 = vmul.f32 %v1152, %v1182
        %v1194 = vmul.f32 %v1153, %v1186
        %v1195 = vpack.c.bf16 %v1189, %v1187
        %v1196 = vpack.c.bf16 %v1190, %v1188
        %v1197 = vpack.c.bf16 %v1193, %v1191
        %v1198 = vpack.c.bf16 %v1194, %v1192
        %1203 = vrot.lane.b32.xlu0 %v1195, 1
        %v1204 = vpop.permute.xlu0 %1203
        %1205 = vrot.lane.b32.xlu0 %v1196, 1
        %v1206 = vpop.permute.xlu0 %1205
        %1207 = vrot.lane.b32.xlu0 %v1197, 1
        %v1208 = vpop.permute.xlu0 %1207
        %1209 = vrot.lane.b32.xlu0 %v1198, 1
        %v1210 = vpop.permute.xlu0 %1209
        %v1211 = vsel %vm762, %v1204, %v1206
        %v1212 = vsel %vm762, %v1208, %v1210
        %1217 = vst.msk [vmem:[#allocation3] sm:$0xff] %vm769, %v1204
        %vm1218 = vcmask 416768
        %1219 = vst.msk [vmem:[#allocation3 + $0x8] sm:$0xff] %vm1218, %v1211
        %1220 = vst.msk [vmem:[#allocation3 + $0x10] sm:$0xff] %vm769, %v1208
        %1221 = vst.msk [vmem:[#allocation3 + $0x18] sm:$0xff] %vm1218, %v1212
        %vm1222 = vcmask 425368
        %1223 = vst.msk [vmem:[#allocation3 + $0x8] sm:$0xff] %vm1222, 0
        %1224 = vst.msk [vmem:[#allocation3 + $0x18] sm:$0xff] %vm1222, 0
        %v1225 = vld [vmem:[#allocation3] sm:$0xff]
        %v1226 = vld [vmem:[#allocation3 + $0x8] sm:$0xff]
        %v1227 = vld [vmem:[#allocation3 + $0x10] sm:$0xff]
        %v1228 = vld [vmem:[#allocation3 + $0x18] sm:$0xff]
        %1229 = vst [vmem:[#allocation2] sm:$0xff] %v1225
        %vm1230 = vcmask 113664
        %1231 = vst.msk [vmem:[#allocation2 + $0x8] sm:$0xff] %vm1230, %v1226
        %1232 = vst [vmem:[#allocation2 + $0x10] sm:$0xff] %v1227
        %1233 = vst.msk [vmem:[#allocation2 + $0x18] sm:$0xff] %vm1230, %v1228
        %1238 = vrot.lane.b32.xlu0 %v1225, 127
        %v1239 = vpop.permute.xlu0 %1238
        %1240 = vrot.lane.b32.xlu0 %v1226, 127
        %v1241 = vpop.permute.xlu0 %1240
        %1242 = vrot.lane.b32.xlu0 %v1227, 127
        %v1243 = vpop.permute.xlu0 %1242
        %1244 = vrot.lane.b32.xlu0 %v1228, 127
        %v1245 = vpop.permute.xlu0 %1244
        %v1246 = vsel %vm496, %v1239, %v1241
        %v1247 = vsel %vm496, %v1243, %v1245
        %1252 = vst [vmem:[#allocation2 + $0x20] sm:$0xff] %v1246
        %1253 = vst.msk [vmem:[#allocation2 + $0x28] sm:$0xff] %vm1230, %v1241
        %1254 = vst [vmem:[#allocation2 + $0x30] sm:$0xff] %v1247
        %1255 = vst.msk [vmem:[#allocation2 + $0x38] sm:$0xff] %vm1230, %v1245
        %1256 = vrot.lane.b32.xlu0 %v1225, 126
        %v1257 = vpop.permute.xlu0 %1256
        %1258 = vrot.lane.b32.xlu0 %v1226, 126
        %v1259 = vpop.permute.xlu0 %1258
        %1260 = vrot.lane.b32.xlu0 %v1227, 126
        %v1261 = vpop.permute.xlu0 %1260
        %1262 = vrot.lane.b32.xlu0 %v1228, 126
        %v1263 = vpop.permute.xlu0 %1262
        %v1264 = vsel %vm506, %v1257, %v1259
        %v1265 = vsel %vm506, %v1261, %v1263
        %1270 = vst [vmem:[#allocation2 + $0x40] sm:$0xff] %v1264
        %1271 = vst.msk [vmem:[#allocation2 + $0x48] sm:$0xff] %vm1230, %v1259
        %1272 = vst [vmem:[#allocation2 + $0x50] sm:$0xff] %v1265
        %1273 = vst.msk [vmem:[#allocation2 + $0x58] sm:$0xff] %vm1230, %v1263
        %1274 = vrot.lane.b32.xlu0 %v1225, 110
        %v1275 = vpop.permute.xlu0 %1274
        %1276 = vrot.lane.b32.xlu0 %v1226, 110
        %v1277 = vpop.permute.xlu0 %1276
        %1278 = vrot.lane.b32.xlu0 %v1227, 110
        %v1279 = vpop.permute.xlu0 %1278
        %1280 = vrot.lane.b32.xlu0 %v1228, 110
        %v1281 = vpop.permute.xlu0 %1280
        %v1282 = vsel %vm516, %v1275, %v1277
        %v1283 = vsel %vm516, %v1279, %v1281
        %1288 = vst [vmem:[#allocation2 + $0x60] sm:$0xff] %v1282
        %1289 = vst.msk [vmem:[#allocation2 + $0x68] sm:$0xff] %vm1230, %v1277
        %1290 = vst [vmem:[#allocation2 + $0x70] sm:$0xff] %v1283
        %1291 = vst.msk [vmem:[#allocation2 + $0x78] sm:$0xff] %vm1230, %v1281
        %1292 = vrot.lane.b32.xlu0 %v1225, 109
        %v1293 = vpop.permute.xlu0 %1292
        %1294 = vrot.lane.b32.xlu0 %v1226, 109
        %v1295 = vpop.permute.xlu0 %1294
        %1296 = vrot.lane.b32.xlu0 %v1227, 109
        %v1297 = vpop.permute.xlu0 %1296
        %1298 = vrot.lane.b32.xlu0 %v1228, 109
        %v1299 = vpop.permute.xlu0 %1298
        %v1300 = vsel %vm526, %v1293, %v1295
        %v1301 = vsel %vm526, %v1297, %v1299
        %1306 = vst [vmem:[#allocation2 + $0x80] sm:$0xff] %v1300
        %1307 = vst.msk [vmem:[#allocation2 + $0x88] sm:$0xff] %vm1230, %v1295
        %1308 = vst [vmem:[#allocation2 + $0x90] sm:$0xff] %v1301
        %1309 = vst.msk [vmem:[#allocation2 + $0x98] sm:$0xff] %vm1230, %v1299
        %1310 = vrot.lane.b32.xlu0 %v1225, 108
        %v1311 = vpop.permute.xlu0 %1310
        %1312 = vrot.lane.b32.xlu0 %v1226, 108
        %v1313 = vpop.permute.xlu0 %1312
        %1314 = vrot.lane.b32.xlu0 %v1227, 108
        %v1315 = vpop.permute.xlu0 %1314
        %1316 = vrot.lane.b32.xlu0 %v1228, 108
        %v1317 = vpop.permute.xlu0 %1316
        %v1318 = vsel %vm536, %v1311, %v1313
        %v1319 = vsel %vm536, %v1315, %v1317
        %1324 = vst [vmem:[#allocation2 + $0xa0] sm:$0xff] %v1318
        %1325 = vst.msk [vmem:[#allocation2 + $0xa8] sm:$0xff] %vm1230, %v1313
        %1326 = vst [vmem:[#allocation2 + $0xb0] sm:$0xff] %v1319
        %1327 = vst.msk [vmem:[#allocation2 + $0xb8] sm:$0xff] %vm1230, %v1317
        %1328 = vrot.lane.b32.xlu0 %v1225, 92
        %v1329 = vpop.permute.xlu0 %1328
        %1330 = vrot.lane.b32.xlu0 %v1226, 92
        %v1331 = vpop.permute.xlu0 %1330
        %1332 = vrot.lane.b32.xlu0 %v1227, 92
        %v1333 = vpop.permute.xlu0 %1332
        %1334 = vrot.lane.b32.xlu0 %v1228, 92
        %v1335 = vpop.permute.xlu0 %1334
        %v1336 = vsel %vm546, %v1329, %v1331
        %v1337 = vsel %vm546, %v1333, %v1335
        %1342 = vst [vmem:[#allocation2 + $0xc0] sm:$0xff] %v1336
        %1343 = vst.msk [vmem:[#allocation2 + $0xc8] sm:$0xff] %vm1230, %v1331
        %1344 = vst [vmem:[#allocation2 + $0xd0] sm:$0xff] %v1337
        %1345 = vst.msk [vmem:[#allocation2 + $0xd8] sm:$0xff] %vm1230, %v1335
        %1346 = vrot.lane.b32.xlu0 %v1225, 91
        %v1347 = vpop.permute.xlu0 %1346
        %1348 = vrot.lane.b32.xlu0 %v1226, 91
        %v1349 = vpop.permute.xlu0 %1348
        %1350 = vrot.lane.b32.xlu0 %v1227, 91
        %v1351 = vpop.permute.xlu0 %1350
        %1352 = vrot.lane.b32.xlu0 %v1228, 91
        %v1353 = vpop.permute.xlu0 %1352
        %v1354 = vsel %vm556, %v1347, %v1349
        %v1355 = vsel %vm556, %v1351, %v1353
        %1360 = vst [vmem:[#allocation2 + $0xe0] sm:$0xff] %v1354
        %1361 = vst.msk [vmem:[#allocation2 + $0xe8] sm:$0xff] %vm1230, %v1349
        %1362 = vst [vmem:[#allocation2 + $0xf0] sm:$0xff] %v1355
        %1363 = vst.msk [vmem:[#allocation2 + $0xf8] sm:$0xff] %vm1230, %v1353
        %1364 = vrot.lane.b32.xlu0 %v1225, 90
        %v1365 = vpop.permute.xlu0 %1364
        %1366 = vrot.lane.b32.xlu0 %v1226, 90
        %v1367 = vpop.permute.xlu0 %1366
        %1368 = vrot.lane.b32.xlu0 %v1227, 90
        %v1369 = vpop.permute.xlu0 %1368
        %1370 = vrot.lane.b32.xlu0 %v1228, 90
        %v1371 = vpop.permute.xlu0 %1370
        %v1372 = vsel %vm566, %v1365, %v1367
        %v1373 = vsel %vm566, %v1369, %v1371
        %1378 = vst [vmem:[#allocation2 + $0x100] sm:$0xff] %v1372
        %1379 = vst.msk [vmem:[#allocation2 + $0x108] sm:$0xff] %vm1230, %v1367
        %1380 = vst [vmem:[#allocation2 + $0x110] sm:$0xff] %v1373
        %1381 = vst.msk [vmem:[#allocation2 + $0x118] sm:$0xff] %vm1230, %v1371
        %v1382 = vld [vmem:[#allocation10] sm:$0xff]
        %v1383 = vld [vmem:[#allocation10 + $0x8] sm:$0xf]
        %v1384 = vld [vmem:[#allocation10 + $0xc] sm:$0xff]
        %v1385 = vld [vmem:[#allocation10 + $0x14] sm:$0xf]
        %v1386 = vld [vmem:[#allocation10 + $0x18] sm:$0xff]
        %v1387 = vld [vmem:[#allocation10 + $0x20] sm:$0xf]
        %v1388 = vld [vmem:[#allocation10 + $0x24] sm:$0xff]
        %v1389 = vld [vmem:[#allocation10 + $0x2c] sm:$0xf]
        %v1390 = vld [vmem:[#allocation2] sm:$0xff]
        %v1391 = vld [vmem:[#allocation2 + $0x8] sm:$0xff]
        %v1392 = vld [vmem:[#allocation2 + $0x10] sm:$0xff]
        %v1393 = vld [vmem:[#allocation2 + $0x18] sm:$0xff]
        %v1394 = vld [vmem:[#allocation2 + $0x20] sm:$0xff]
        %v1395 = vld [vmem:[#allocation2 + $0x28] sm:$0xff]
        %v1396 = vld [vmem:[#allocation2 + $0x30] sm:$0xff]
        %v1397 = vld [vmem:[#allocation2 + $0x38] sm:$0xff]
        %v1398 = vld [vmem:[#allocation2 + $0x40] sm:$0xff]
        %v1399 = vld [vmem:[#allocation2 + $0x48] sm:$0xff]
        %v1400 = vld [vmem:[#allocation2 + $0x50] sm:$0xff]
        %v1401 = vld [vmem:[#allocation2 + $0x58] sm:$0xff]
        %v1402 = vld [vmem:[#allocation2 + $0x60] sm:$0xff]
        %v1403 = vld [vmem:[#allocation2 + $0x68] sm:$0xff]
        %v1404 = vld [vmem:[#allocation2 + $0x70] sm:$0xff]
        %v1405 = vld [vmem:[#allocation2 + $0x78] sm:$0xff]
        %v1406 = vld [vmem:[#allocation2 + $0x80] sm:$0xff]
        %v1407 = vld [vmem:[#allocation2 + $0x88] sm:$0xff]
        %v1408 = vld [vmem:[#allocation2 + $0x90] sm:$0xff]
        %v1409 = vld [vmem:[#allocation2 + $0x98] sm:$0xff]
        %v1410 = vld [vmem:[#allocation2 + $0xa0] sm:$0xff]
        %v1411 = vld [vmem:[#allocation2 + $0xa8] sm:$0xff]
        %v1412 = vld [vmem:[#allocation2 + $0xb0] sm:$0xff]
        %v1413 = vld [vmem:[#allocation2 + $0xb8] sm:$0xff]
        %v1414 = vld [vmem:[#allocation2 + $0xc0] sm:$0xff]
        %v1415 = vld [vmem:[#allocation2 + $0xc8] sm:$0xff]
        %v1416 = vld [vmem:[#allocation2 + $0xd0] sm:$0xff]
        %v1417 = vld [vmem:[#allocation2 + $0xd8] sm:$0xff]
        %v1418 = vld [vmem:[#allocation2 + $0xe0] sm:$0xff]
        %v1419 = vld [vmem:[#allocation2 + $0xe8] sm:$0xff]
        %v1420 = vld [vmem:[#allocation2 + $0xf0] sm:$0xff]
        %v1421 = vld [vmem:[#allocation2 + $0xf8] sm:$0xff]
        %v1422 = vld [vmem:[#allocation2 + $0x100] sm:$0xff]
        %v1423 = vld [vmem:[#allocation2 + $0x108] sm:$0xff]
        %v1424 = vld [vmem:[#allocation2 + $0x110] sm:$0xff]
        %v1425 = vld [vmem:[#allocation2 + $0x118] sm:$0xff]
        %v1426 = vld [vmem:[%s7] sm:$0xff]
        %v1427 = vld [vmem:[%s7 + $0x8] sm:$0xff]
        %v1428 = vld [vmem:[%s7 + $0x10] sm:$0xff]
        %v1429 = vld [vmem:[%s7 + $0x18] sm:$0xff]
        %1431 = vset.pattern.permute.xlu0 0
        %1432 = vperm.xlu0 %1431, %v1426
        %v1433 = vpop.permute.xlu0 %1432
        %1436 = vset.pattern.permute.xlu0 0
        %1437 = vperm.xlu0 %1436, %v1427
        %v1438 = vpop.permute.xlu0 %1437
        %1441 = vset.pattern.permute.xlu0 0
        %1442 = vperm.xlu0 %1441, %v1428
        %v1443 = vpop.permute.xlu0 %1442
        %1446 = vset.pattern.permute.xlu0 0
        %1447 = vperm.xlu0 %1446, %v1429
        %v1448 = vpop.permute.xlu0 %1447
        %v1458 = vunpack.c.l.b16 %v1382
        %v1459 = vunpack.c.h.b16 %v1382
        %v1460 = vunpack.c.l.b16 %v1383
        %v1461 = vunpack.c.l.b16 %v1384
        %v1462 = vunpack.c.h.b16 %v1384
        %v1463 = vunpack.c.l.b16 %v1385
        %v1464 = vunpack.c.l.b16 %v1386
        %v1465 = vunpack.c.h.b16 %v1386
        %v1466 = vunpack.c.l.b16 %v1387
        %v1467 = vunpack.c.l.b16 %v1388
        %v1468 = vunpack.c.h.b16 %v1388
        %v1469 = vunpack.c.l.b16 %v1389
        %v1470 = vpack.c.b16 %v1461, %v1458
        %v1471 = vpack.c.b16 %v1462, %v1459
        %v1472 = vpack.c.b16 %v1463, %v1460
        %v1473 = vpack.c.b16 %v1467, %v1464
        %v1474 = vpack.c.b16 %v1468, %v1465
        %v1475 = vpack.c.b16 %v1469, %v1466
        %v1481 = vsel %vm1033, %v1472, 0
        %v1484 = vsel %vm1033, %v1475, 0
        %1486 = vmatprep.subr.bf16.mxu0 %v1391
        %1487 = vmatpush1.bf16.msra.mxu0 %v1390
        %1488 = vmatprep.subr.bf16.mxu0 %v1393
        %1489 = vmatpush1.bf16.msra.mxu0 %v1392
        %1490 = vmatprep.subr.bf16.mxu0 %v1395
        %1491 = vmatpush1.bf16.msra.mxu0 %v1394
        %1492 = vmatprep.subr.bf16.mxu0 %v1397
        %1493 = vmatpush1.bf16.msra.mxu0 %v1396
        %1494 = vmatprep.subr.bf16.mxu0 %v1399
        %1495 = vmatpush1.bf16.msra.mxu0 %v1398
        %1496 = vmatprep.subr.bf16.mxu0 %v1401
        %1497 = vmatpush1.bf16.msra.mxu0 %v1400
        %1498 = vmatprep.subr.bf16.mxu0 %v1403
        %1499 = vmatpush1.bf16.msra.mxu0 %v1402
        %1500 = vmatprep.subr.bf16.mxu0 %v1405
        %1501 = vmatpush1.bf16.msra.mxu0 %v1404
        %1502 = vmatprep.subr.bf16.mxu0 %v1407
        %1503 = vmatpush1.bf16.msra.mxu0 %v1406
        %1504 = vmatprep.subr.bf16.mxu0 %v1409
        %1505 = vmatpush1.bf16.msra.mxu0 %v1408
        %1506 = vmatprep.subr.bf16.mxu0 %v1411
        %1507 = vmatpush1.bf16.msra.mxu0 %v1410
        %1508 = vmatprep.subr.bf16.mxu0 %v1413
        %1509 = vmatpush1.bf16.msra.mxu0 %v1412
        %1510 = vmatprep.subr.bf16.mxu0 %v1415
        %1511 = vmatpush1.bf16.msra.mxu0 %v1414
        %1512 = vmatprep.subr.bf16.mxu0 %v1417
        %1513 = vmatpush1.bf16.msra.mxu0 %v1416
        %1514 = vmatprep.subr.bf16.mxu0 %v1419
        %1515 = vmatpush1.bf16.msra.mxu0 %v1418
        %1516 = vmatprep.subr.bf16.mxu0 %v1421
        %1517 = vmatpush1.bf16.msra.mxu0 %v1420
        %1518 = vmatprep.mubr.bf16.mxu0 %v1471
        %1519 = vmatmul.mubr.bf16.gmra.mrb[0].mxu0 %v1470
        %v1520 = vpop.f32.mrb[0].mxu0
        %v1521 = vadd.f32 %v1433, %v1520
        %v1522 = vpop.f32.mrb[0].mxu0
        %v1523 = vadd.f32 %v1433, %v1522
        %v1524 = vpop.f32.mrb[0].mxu0
        %v1525 = vadd.f32 %v1438, %v1524
        %v1526 = vpop.f32.mrb[0].mxu0
        %v1527 = vadd.f32 %v1438, %v1526
        %1528 = vmatprep.mubr.bf16.mxu0 %v1474
        %1529 = vmatmul.mubr.bf16.gmra.mrb[0].mxu0 %v1473
        %v1530 = vpop.f32.mrb[0].mxu0
        %v1531 = vadd.f32 %v1443, %v1530
        %v1532 = vpop.f32.mrb[0].mxu0
        %v1533 = vadd.f32 %v1443, %v1532
        %v1534 = vpop.f32.mrb[0].mxu0
        %v1535 = vadd.f32 %v1448, %v1534
        %v1536 = vpop.f32.mrb[0].mxu0
        %v1537 = vadd.f32 %v1448, %v1536
        %1538 = vdwg.mxu0
        %1539 = vmatprep.subr.bf16.mxu0 %v1423
        %1540 = vmatpush1.bf16.msra.mxu0 %v1422
        %1541 = vmatprep.subr.bf16.mxu0 %v1425
        %1542 = vmatpush1.bf16.msra.mxu0 %v1424
        %1543 = vmatprep.subr.bf16.mxu0 0
        %1544 = vmatpush1.bf16.msra.mxu0 0
        %1545 = vmatprep.subr.bf16.mxu0 0
        %1546 = vmatpush1.bf16.msra.mxu0 0
        %1547 = vmatprep.subr.bf16.mxu0 0
        %1548 = vmatpush1.bf16.msra.mxu0 0
        %1549 = vmatprep.subr.bf16.mxu0 0
        %1550 = vmatpush1.bf16.msra.mxu0 0
        %1551 = vmatprep.subr.bf16.mxu0 0
        %1552 = vmatpush1.bf16.msra.mxu0 0
        %1553 = vmatprep.subr.bf16.mxu0 0
        %1554 = vmatpush1.bf16.msra.mxu0 0
        %1555 = vmatprep.subr.bf16.mxu0 0
        %1556 = vmatpush1.bf16.msra.mxu0 0
        %1557 = vmatprep.subr.bf16.mxu0 0
        %1558 = vmatpush1.bf16.msra.mxu0 0
        %1559 = vmatprep.subr.bf16.mxu0 0
        %1560 = vmatpush1.bf16.msra.mxu0 0
        %1561 = vmatprep.subr.bf16.mxu0 0
        %1562 = vmatpush1.bf16.msra.mxu0 0
        %1563 = vmatprep.subr.bf16.mxu0 0
        %1564 = vmatpush1.bf16.msra.mxu0 0
        %1565 = vmatprep.subr.bf16.mxu0 0
        %1566 = vmatpush1.bf16.msra.mxu0 0
        %1567 = vmatprep.subr.bf16.mxu0 0
        %1568 = vmatpush1.bf16.msra.mxu0 0
        %1569 = vmatprep.subr.bf16.mxu0 0
        %1570 = vmatpush1.bf16.msra.mxu0 0
        %1571 = vmatprep.mubr.bf16.mxu0 0
        %1572 = vmatmul.mubr.bf16.gmra.mrb[0].mxu0 %v1481
        %v1573 = vpop.f32.mrb[0].mxu0
        %v1574 = vadd.f32 %v1521, %v1573
        %v1575 = vpop.f32.mrb[0].mxu0
        %v1576 = vadd.f32 %v1523, %v1575
        %v1577 = vpop.f32.mrb[0].mxu0
        %v1578 = vadd.f32 %v1525, %v1577
        %v1579 = vpop.f32.mrb[0].mxu0
        %v1580 = vadd.f32 %v1527, %v1579
        %1581 = vmatprep.mubr.bf16.mxu0 0
        %1582 = vmatmul.mubr.bf16.gmra.mrb[0].mxu0 %v1484
        %v1583 = vpop.f32.mrb[0].mxu0
        %v1584 = vadd.f32 %v1531, %v1583
        %v1585 = vpop.f32.mrb[0].mxu0
        %v1586 = vadd.f32 %v1533, %v1585
        %v1587 = vpop.f32.mrb[0].mxu0
        %v1588 = vadd.f32 %v1535, %v1587
        %v1589 = vpop.f32.mrb[0].mxu0
        %v1590 = vadd.f32 %v1537, %v1589
        %1591 = vdwg.mxu0
        %v1592 = vmax.f32 %v1574, 0.0
        %v1593 = vmax.f32 %v1576, 0.0
        %v1594 = vmax.f32 %v1578, 0.0
        %v1595 = vmax.f32 %v1580, 0.0
        %v1596 = vmax.f32 %v1584, 0.0
        %v1597 = vmax.f32 %v1586, 0.0
        %v1598 = vmax.f32 %v1588, 0.0
        %v1599 = vmax.f32 %v1590, 0.0
        %v1600 = vld [vmem:[%s8] sm:$0xf]
        %v1601 = vld [vmem:[%s8 + $0x4] sm:$0xf]
        %v1602 = vpack.c.bf16 %v1594, %v1592
        %v1603 = vpack.c.bf16 %v1595, %v1593
        %v1604 = vpack.c.bf16 %v1598, %v1596
        %v1605 = vpack.c.bf16 %v1599, %v1597
        %v1606 = vld [vmem:[%s9] sm:$0xff]
        %v1607 = vld [vmem:[%s9 + $0x8] sm:$0xff]
        %1609 = vset.pattern.permute.xlu0 0
        %1610 = vperm.xlu0 %1609, %v1606
        %v1611 = vpop.permute.xlu0 %1610
        %1614 = vset.pattern.permute.xlu0 0
        %1615 = vperm.xlu0 %1614, %v1607
        %v1616 = vpop.permute.xlu0 %1615
        %v1620 = vunpack.c.l.b16 %v1600
        %v1621 = vunpack.c.l.b16 %v1601
        %v1622 = vpack.c.b16 %v1621, %v1620
        %v1624 = vsel %vm1033, %v1622, 0
        %1626 = vmatprep.subr.bf16.mxu0 %v1603
        %1627 = vmatpush1.bf16.msra.mxu0 %v1602
        %1628 = vmatprep.subr.bf16.mxu0 %v1605
        %1629 = vmatpush1.bf16.msra.mxu0 %v1604
        %1630 = vmatprep.subr.bf16.mxu0 0
        %1631 = vmatpush1.bf16.msra.mxu0 0
        %1632 = vmatprep.subr.bf16.mxu0 0
        %1633 = vmatpush1.bf16.msra.mxu0 0
        %1634 = vmatprep.subr.bf16.mxu0 0
        %1635 = vmatpush1.bf16.msra.mxu0 0
        %1636 = vmatprep.subr.bf16.mxu0 0
        %1637 = vmatpush1.bf16.msra.mxu0 0
        %1638 = vmatprep.subr.bf16.mxu0 0
        %1639 = vmatpush1.bf16.msra.mxu0 0
        %1640 = vmatprep.subr.bf16.mxu0 0
        %1641 = vmatpush1.bf16.msra.mxu0 0
        %1642 = vmatprep.subr.bf16.mxu0 0
        %1643 = vmatpush1.bf16.msra.mxu0 0
        %1644 = vmatprep.subr.bf16.mxu0 0
        %1645 = vmatpush1.bf16.msra.mxu0 0
        %1646 = vmatprep.subr.bf16.mxu0 0
        %1647 = vmatpush1.bf16.msra.mxu0 0
        %1648 = vmatprep.subr.bf16.mxu0 0
        %1649 = vmatpush1.bf16.msra.mxu0 0
        %1650 = vmatprep.subr.bf16.mxu0 0
        %1651 = vmatpush1.bf16.msra.mxu0 0
        %1652 = vmatprep.subr.bf16.mxu0 0
        %1653 = vmatpush1.bf16.msra.mxu0 0
        %1654 = vmatprep.subr.bf16.mxu0 0
        %1655 = vmatpush1.bf16.msra.mxu0 0
        %1656 = vmatprep.subr.bf16.mxu0 0
        %1657 = vmatpush1.bf16.msra.mxu0 0
        %1658 = vmatprep.mubr.bf16.mxu0 0
        %1659 = vmatmul.mubr.bf16.gmra.mrb[0].mxu0 %v1624
        %v1660 = vpop.f32.mrb[0].mxu0
        %v1661 = vadd.f32 %v1611, %v1660
        %v1662 = vpop.f32.mrb[0].mxu0
        %v1663 = vadd.f32 %v1611, %v1662
        %v1664 = vpop.f32.mrb[0].mxu0
        %v1665 = vadd.f32 %v1616, %v1664
        %v1666 = vpop.f32.mrb[0].mxu0
        %v1667 = vadd.f32 %v1616, %v1666
        %1668 = vdwg.mxu0
        %v1669 = vmin.f32 %v1665, 4.1351666
        %v1670 = vmin.f32 %v1667, 4.1351666
        %v1671 = vstv %s471
        %v1672 = vadd.f32 %v1671, %v476
        %vm1673 = vcmask 1040384
        %v1674 = vsel %vm1673, 1.5, 3.5
        %vm1675 = vcmask 1041408
        %v1676 = vsel %vm1675, %v1674, 7.5
        %v1678 = vlaneseq
        %v1679 = vshrl.u32 %v1678, 7
        %v1680 = vsub.s32 2, %v1679
        %v1681 = vrot.slane %v476, %v1680
        %v1682 = vlaneseq
        %v1683 = vshrl.u32 %v1682, 7
        %v1684 = vsub.s32 6, %v1683
        %v1685 = vrot.slane %v476, %v1684
        %v1688 = vlaneseq
        %v1689 = vshrl.u32 %v1688, 7
        %v1690 = vsub.s32 2, %v1689
        %v1691 = vrot.slane %v1681, %v1690
        %v1692 = vlaneseq
        %v1693 = vshrl.u32 %v1692, 7
        %v1694 = vsub.s32 2, %v1693
        %v1695 = vrot.slane %v1685, %v1694
        %1697 = vset.pattern.permute.xlu0 0
        %1698 = vperm.xlu0 %1697, %v1676
        %v1699 = vpop.permute.xlu0 %1698
        %v1701 = vsub.f32 %v1691, %v1699
        %v1702 = vsub.f32 %v1695, %v1699
        %v1704 = vlaneseq
        %v1705 = vshrl.u32 %v1704, 7
        %v1706 = vsub.s32 1, %v1705
        %v1707 = vrot.slane %v1672, %v1706
        %v1708 = vlaneseq
        %v1709 = vshrl.u32 %v1708, 7
        %v1710 = vsub.s32 5, %v1709
        %v1711 = vrot.slane %v1672, %v1710
        %v1714 = vlaneseq
        %v1715 = vshrl.u32 %v1714, 7
        %v1716 = vsub.s32 1, %v1715
        %v1717 = vrot.slane %v1707, %v1716
        %v1718 = vlaneseq
        %v1719 = vshrl.u32 %v1718, 7
        %v1720 = vsub.s32 1, %v1719
        %v1721 = vrot.slane %v1711, %v1720
        %v1722 = vsub.f32 %v1717, %v1699
        %v1723 = vsub.f32 %v1721, %v1699
        %v1724 = vadd.f32 %v1691, %v1699
        %v1725 = vadd.f32 %v1695, %v1699
        %v1726 = vadd.f32 %v1717, %v1699
        %v1727 = vadd.f32 %v1721, %v1699
        %v1728 = vsub.f32 %v1724, %v1701
        %v1729 = vsub.f32 %v1725, %v1702
        %v1730 = vadd.f32 %v1728, 1.0
        %v1731 = vadd.f32 %v1729, 1.0
        %v1732 = vsub.f32 %v1726, %v1722
        %v1733 = vsub.f32 %v1727, %v1723
        %v1734 = vadd.f32 %v1732, 1.0
        %v1735 = vadd.f32 %v1733, 1.0
        %v1736 = vmul.f32 %v1730, 0.5
        %v1737 = vmul.f32 %v1731, 0.5
        %v1738 = vadd.f32 %v1701, %v1736
        %v1739 = vadd.f32 %v1702, %v1737
        %v1740 = vmul.f32 %v1734, 0.5
        %v1741 = vmul.f32 %v1735, 0.5
        %v1742 = vadd.f32 %v1722, %v1740
        %v1743 = vadd.f32 %v1723, %v1741
        %v1746 = vrot.slane %v1730, 5
        %v1747 = vrot.slane %v1731, 5
        %v1750 = vmul.f32 %v1661, %v1746
        %v1751 = vmul.f32 %v1663, %v1747
        %v1754 = vrot.slane %v1738, 5
        %v1755 = vrot.slane %v1739, 5
        %v1758 = vadd.f32 %v1750, %v1754
        %v1759 = vadd.f32 %v1751, %v1755
        %v1762 = vrot.slane %v1734, 2
        %v1763 = vrot.slane %v1735, 2
        %v1766 = vmul.f32 %v1661, %v1762
        %v1767 = vmul.f32 %v1663, %v1763
        %v1768 = vmul.f32 %v1665, %v1762
        %v1769 = vmul.f32 %v1667, %v1763
        %v1772 = vrot.slane %v1742, 2
        %v1773 = vrot.slane %v1743, 2
        %v1776 = vadd.f32 %v1766, %v1772
        %v1777 = vadd.f32 %v1767, %v1773
        %v1778 = vadd.f32 %v1768, %v1772
        %v1779 = vadd.f32 %v1769, %v1773
        %v1780 = vmul.f32 %v1669, 1.442695
        %v1781 = vpow.pop %v1780
        %v1782 = vmul.f32 %v1670, 1.442695
        %v1783 = vpow.pop %v1782
        %v1784 = vrot.slane %v1730, 7
        %v1785 = vrot.slane %v1731, 7
        %v1788 = vmul.f32 %v1781, %v1784
        %v1789 = vmul.f32 %v1783, %v1785
        %v1790 = vrot.slane %v1734, 4
        %v1791 = vrot.slane %v1735, 4
        %v1794 = vmul.f32 %v1781, %v1790
        %v1795 = vmul.f32 %v1783, %v1791
        %v1796 = vmul.f32 %v1788, 0.5
        %v1797 = vmul.f32 %v1789, 0.5
        %v1800 = vrot.slane %v1796, 6
        %v1801 = vrot.slane %v1797, 6
        %v1804 = vsub.f32 %v1758, %v1800
        %v1805 = vsub.f32 %v1759, %v1801
        %s1806 = ssub.f32 %s475, 1.0
        %v1807 = vmax.f32 %v1804, 0.0
        %v1808 = vmax.f32 %v1805, 0.0
        %v1809 = vstv %s1806
        %v1810 = vmin.f32 %v1809, %v1807
        %v1811 = vmin.f32 %v1809, %v1808
        %v1812 = vmul.f32 %v1794, 0.5
        %v1813 = vmul.f32 %v1795, 0.5
        %v1816 = vrot.slane %v1812, 6
        %v1817 = vrot.slane %v1813, 6
        %v1820 = vsub.f32 %v1776, %v1816
        %v1821 = vsub.f32 %v1777, %v1817
        %v1822 = vsub.f32 %v1778, %v1816
        %v1823 = vsub.f32 %v1779, %v1817
        %s1824 = ssub.f32 %s473, 1.0
        %v1825 = vmax.f32 %v1820, 0.0
        %v1826 = vmax.f32 %v1821, 0.0
        %v1827 = vmax.f32 %v1822, 0.0
        %v1828 = vmax.f32 %v1823, 0.0
        %v1829 = vstv %s1824
        %v1830 = vmin.f32 %v1829, %v1825
        %v1831 = vmin.f32 %v1829, %v1826
        %v1832 = vmin.f32 %v1829, %v1827
        %v1833 = vmin.f32 %v1829, %v1828
        %v1834 = vadd.f32 %v1758, %v1800
        %v1835 = vadd.f32 %v1759, %v1801
        %v1836 = vsub.f32 %v1834, 1.0
        %v1837 = vsub.f32 %v1835, 1.0
        %v1838 = vmax.f32 %v1836, 0.0
        %v1839 = vmax.f32 %v1837, 0.0
        %v1840 = vmin.f32 %v1809, %v1838
        %v1841 = vmin.f32 %v1809, %v1839
        %v1842 = vadd.f32 %v1776, %v1816
        %v1843 = vadd.f32 %v1777, %v1817
        %v1844 = vadd.f32 %v1778, %v1816
        %v1845 = vadd.f32 %v1779, %v1817
        %v1846 = vsub.f32 %v1842, 1.0
        %v1847 = vsub.f32 %v1843, 1.0
        %v1848 = vsub.f32 %v1844, 1.0
        %v1849 = vsub.f32 %v1845, 1.0
        %v1850 = vmax.f32 %v1846, 0.0
        %v1851 = vmax.f32 %v1847, 0.0
        %v1852 = vmax.f32 %v1848, 0.0
        %v1853 = vmax.f32 %v1849, 0.0
        %v1854 = vmin.f32 %v1829, %v1850
        %v1855 = vmin.f32 %v1829, %v1851
        %v1856 = vmin.f32 %v1829, %v1852
        %v1857 = vmin.f32 %v1829, %v1853
        %vm1858 = vcmp.gt.f32.partialorder %v476, 0.0
        %vm1859 = vcmp.le.f32.partialorder %v1672, 15.0
        %v1860 = vsel %vm1859, 1, 0
        %v1861 = vrot.slane %v1860, 5
        %v1862 = vrot.slane %v1861, 4
        %vm1863 = vcmp.ne.s32.totalorder %v1862, 0
        %vm1864 = vmand %vm1858, %vm1863
        %v1865 = vxor.u32 %v1661, 2147483648
        %v1866 = vxor.u32 %v1663, 2147483648
        %v1867 = vmul.f32 %v1865, 1.442695
        %v1868 = vpow.pop %v1867
        %v1869 = vmul.f32 %v1866, 1.442695
        %v1870 = vpow.pop %v1869
        %v1871 = vadd.f32 %v1868, 1.0
        %v1872 = vadd.f32 %v1870, 1.0
        %v1873 = vrcp.pop %v1871
        %v1874 = vmul.f32 1.0, %v1873
        %v1875 = vrcp.pop %v1872
        %v1876 = vmul.f32 1.0, %v1875
        %v1877 = vsel %vm1864, 1, 0
        %v1878 = vlaneseq
        %v1879 = vshrl.u32 %v1878, 7
        %v1880 = vsub.s32 0, %v1879
        %v1881 = vrot.slane %v1877, %v1880
        %v1882 = vlaneseq
        %v1883 = vshrl.u32 %v1882, 7
        %v1884 = vsub.s32 4, %v1883
        %v1885 = vrot.slane %v1877, %v1884
        %v1886 = vlaneseq
        %v1887 = vshrl.u32 %v1886, 7
        %v1888 = vsub.s32 0, %v1887
        %v1889 = vrot.slane %v1881, %v1888
        %v1890 = vlaneseq
        %v1891 = vshrl.u32 %v1890, 7
        %v1892 = vsub.s32 0, %v1891
        %v1893 = vrot.slane %v1885, %v1892
        %vm1894 = vcmp.eq.s32.totalorder %v1889, 1
        %vm1895 = vcmp.eq.s32.totalorder %v1893, 1
        %v1896 = vsel %vm1894, %v1874, -1e+30
        %v1897 = vsel %vm1895, %v1876, -1e+30
        %v1900 = vrot.slane %v1840, 2
        %v1901 = vrot.slane %v1841, 2
        %vm1908 = vcmask 1045504
        %v1909 = vrot.slane %v1854, 2
        %v1910 = vrot.slane %v1856, 2
        %v1911 = vsel %vm1908, %v1909, %v1910
        %v1912 = vrot.slane %v1855, 2
        %v1913 = vrot.slane %v1857, 2
        %v1914 = vsel %vm1908, %v1912, %v1913
        %vm1917 = vcmask 1042432
        %v1918 = vsel %vm1917, %v1896, %v1810
        %v1919 = vsel %vm1917, %v1897, %v1811
        %v1920 = vsel %vm1908, %v1918, %v1830
        %v1921 = vsel %vm1908, %v1919, %v1831
        %v1922 = vsel %vm1673, %v1832, %v1900
        %v1923 = vsel %vm1673, %v1833, %v1901
        %vm1924 = vcmask 1043456
        %v1925 = vsel %vm1924, %v1922, %v1911
        %v1926 = vsel %vm1924, %v1923, %v1914
        %vm1927 = vcmask 1046528
        %v1928 = vsel %vm1927, %v1925, 0.0
        %v1929 = vsel %vm1927, %v1926, 0.0
        %v1930 = vsel %vm1230, %v1921, -1e+30
        %v1931 = vsel %vm1230, %v1929, -1e+30
        %1932 = vst [vmem:[%s459] sm:$0xff] %v1920
        %1933 = vst [vmem:[%s459 + $0x8] sm:$0xff] %v1930
        %1934 = vst [vmem:[%s459 + $0x10] sm:$0xff] %v1928
        %1935 = vst [vmem:[%s459 + $0x18] sm:$0xff] %v1931
        %s1936 = sand.u32 %s288, 1
        %s1937 = scalar_lea.sflag [#allocation6], %s1936
        %s1938 = sand.u32 %s288, 1
        %s1939 = smul.addr %s1938, 32
        %s1940 = scalar_lea.vmem [#allocation12], %s1939
        // Predicated region
        $region81: #{tpu_custom_call.1} parent=63 // pred_check
          %p1941 = pneg %p298
        $region82: #{tpu_custom_call.1} parent=63 // pred_check_branch
          %1943 = sbr.rel (%p1941) target = $region84
        $region83: #{tpu_custom_call.1} parent=63 // pred_region
          %s1945 = ssub.s32 512, 512
          %1946 = vsyncadd %s1937, %s1945
          %s1947 = smul.addr %s33, 4
          %s1948 = smul.addr %s32, 8
          %s1949 = sadd.s32 %s1947, %s1948
          %s1950 = smul.addr %s1949, 128
          %s1951 = scalar_lea.hbm %s11, %s1950
          %s1952 = sshll.u32 %s1940, 4
          %s1953 = int_to_ptr.vmem [resolvable:$true] %s1952
          %1958 = dma.vmem_to_hbm [thread:$0]  %s1953, 512, %s1951, %s1937, 256, 256, 16
        $region84: #{tpu_custom_call.1} parent=63 // pred_fallthru
          _
      $region64: #{tpu_custom_call.1} parent=5 // pred_fallthru
        _
      %p1959 = scmp.le.s32.totalorder 2, %s23
      // Predicated region
      $region85: #{tpu_custom_call.1} parent=5 // pred_check
        %p1960 = pneg %p1959
      $region86: #{tpu_custom_call.1} parent=5 // pred_check_branch
        %1962 = sbr.rel (%p1960) target = $region88
      $region87: #{tpu_custom_call.1} parent=5 // pred_region
        %s1963 = ssub.s32 %s23, 2
        // Predicated region
        $region89: #{tpu_custom_call.1} parent=87 // pred_check
          %p1964 = pneg %p304
        $region90: #{tpu_custom_call.1} parent=87 // pred_check_branch
          %1966 = sbr.rel (%p1964) target = $region92
        $region91: #{tpu_custom_call.1} parent=87 // pred_region
          %s1967 = sand.u32 %s289, 1
          %s1968 = scalar_lea.sflag [#allocation6], %s1967
          %s1969 = sand.u32 %s289, 1
          %s1970 = smul.addr %s1969, 32
          %s1971 = scalar_lea.vmem [#allocation12], %s1970
          %1972 = dma.done %s1968, 512
        $region92: #{tpu_custom_call.1} parent=87 // pred_fallthru
          _
      $region88: #{tpu_custom_call.1} parent=5 // pred_fallthru
        _
    $region6: #{tpu_custom_call.1} parent=1 // loop_footer
      %s27 = sadd.s32 1, %s23
    $region7: #{tpu_custom_call.1} parent=1 // loop_footer_branch
      %22 = sbr.rel target = $region3
    $region8: #{tpu_custom_call.1} parent=1 // loop_exit
      _
    %1973 = vsyncpa [#allocation5], 1
    %s1974 = scalar_lea.sflag [#allocation5], 1
    %1975 = vsyncpa %s1974, 1
    %1976 = vsyncpa [#allocation9], 1
    %1977 = vsyncpa [#allocation6], 1
    %s1978 = scalar_lea.sflag [#allocation6], 1
    %1979 = vsyncpa %s1978, 1
    %1980 = vsyncpa [#allocation7], 1
    %s1981 = scalar_lea.sflag [#allocation7], 1
    %1982 = vsyncpa %s1981, 1

</llo_original>
